<compile_context>
chip_gen: v6e
topology: v6e:2x2x1
jax: 0.10.0
libtpu: 0.0.40
codegen_flags: <defaults>
</compile_context>

<pallas_src>
import functools

import numpy as np
import jax
import jax.numpy as jnp
from jax.experimental import pallas as pl
from jax.experimental.pallas import tpu as pltpu


def _round_up(x, m):
    return ((x + m - 1) // m) * m


# --------------------------------------------------------------------------
# Pallas kernel: fused DoubleConv (conv3x3 -> BN -> ReLU -> conv3x3 -> BN -> ReLU)
# --------------------------------------------------------------------------
def _double_conv_kernel(x2_ref, x1_ref, mask_ref,
                        w1_ref, s1_ref, b1_ref,
                        w2_ref, s2_ref, b2_ref,
                        o_ref, stage_ref, col1_ref, col2_ref,
                        *, Wp, OFF_IN, OFF_ST):
    # x2_ref  : (1, C2, Lpad)   skip features, zero-padded flat layout, bf16
    # x1_ref  : (1, C1, Lpad)   upsampled features, same layout, bf16
    # mask_ref: (1, LOUT)       1.0 on real columns, 0.0 on the 2 pad columns, f32
    # w1_ref  : (Cmid, 9*Cin)   conv1 weight, im2col tap-major (k = ky*3+kx), bf16
    # w2_ref  : (Cout, 9*Cmid)  conv2 weight, bf16
    # s*/b*   : (C, 1)          folded eval-mode BatchNorm scale / bias, f32
    # o_ref   : (1, Cout, LOUT) output in padded-column layout, f32
    # stage_ref: (Cmid, OFF_ST + LOUT + OFF_ST) bf16, conv1 -> conv2 staging
    # col1_ref : (9*Cin,  LOUT) bf16, conv1 im2col
    # col2_ref : (9*Cmid, LOUT) bf16, conv2 im2col
    LOUT = o_ref.shape[2]
    C2 = x2_ref.shape[1]
    C1 = x1_ref.shape[1]
    Cin = C2 + C1
    Cmid = w1_ref.shape[0]

    # ---- conv1 im2col: the channel concat of [x2, x1] happens right here ----
    # Each tap is a contiguous lane slice of the pre-padded input (no masks,
    # no casts); the SAME zero padding comes from the wrapper's jnp.pad.
    for k in range(9):
        ky, kx = divmod(k, 3)
        s = OFF_IN + (ky - 1) * Wp + (kx - 1)
        col1_ref[k * Cin:k * Cin + C2, :] = x2_ref[0, :, s:s + LOUT]
        col1_ref[k * Cin + C2:(k + 1) * Cin, :] = x1_ref[0, :, s:s + LOUT]

    # ---- conv1: one fused MXU dot (K = 9*Cin), f32 accumulation, BN + ReLU ----
    h1 = jnp.dot(w1_ref[...], col1_ref[...], preferred_element_type=jnp.float32)
    h1 = jnp.maximum(h1 * s1_ref[...] + b1_ref[...], 0.0)
    # Re-zero the 2 pad columns: they serve as conv2's left/right zero padding.
    # (All operands are finite by construction, so a multiply is safe.)
    h1 = h1 * mask_ref[...]

    # ---- stage conv1's output (bf16) with a zero row-halo for conv2's taps ----
    # Zero only the Wp+1 halo lanes actually read, every grid step (do NOT gate
    # this on program_id: each megacore TensorCore has its own scratch).
    stage_ref[:, OFF_ST - Wp - 1:OFF_ST] = jnp.zeros((Cmid, Wp + 1), jnp.bfloat16)
    stage_ref[:, OFF_ST + LOUT:OFF_ST + LOUT + Wp + 1] = jnp.zeros(
        (Cmid, Wp + 1), jnp.bfloat16)
    stage_ref[:, OFF_ST:OFF_ST + LOUT] = h1.astype(jnp.bfloat16)

    # ---- conv2 im2col from the staged activation ----
    for k in range(9):
        ky, kx = divmod(k, 3)
        s = OFF_ST + (ky - 1) * Wp + (kx - 1)
        col2_ref[k * Cmid:(k + 1) * Cmid, :] = stage_ref[:, s:s + LOUT]

    out = jnp.dot(w2_ref[...], col2_ref[...], preferred_element_type=jnp.float32)
    out = jnp.maximum(out * s2_ref[...] + b2_ref[...], 0.0)
    # The 2 junk pad columns of `out` are stripped in the wrapper; no mask here.
    o_ref[0] = out.astype(o_ref.dtype)


def double_conv_pallas(x2p, x1p, colmask, H, W,
                       w1_flat, s1, b1, w2_flat, s2, b2):
    """Fused DoubleConv on zero-padded flat inputs.
    x2p, x1p: (N, C, (H+4)*(W+2)) bf16.  Returns (N, Cout, H*(W+2)) f32."""
    N, C2, Lpad = x2p.shape
    C1 = x1p.shape[1]
    Cin = C2 + C1
    Cmid = w1_flat.shape[0]
    Cout = w2_flat.shape[0]
    Wp = W + 2
    LOUT = H * Wp
    assert Lpad == (H + 4) * Wp
    OFF_IN = 2 * Wp                    # image origin inside the padded input
    OFF_ST = _round_up(Wp + 1, 128)    # 128-lane-aligned staging origin

    kernel = functools.partial(_double_conv_kernel, Wp=Wp,
                               OFF_IN=OFF_IN, OFF_ST=OFF_ST)

    flops = 2 * N * LOUT * 9 * (Cin * Cmid + Cmid * Cout)
    bytes_accessed = (2 * N * Lpad * (C2 + C1) + 4 * N * LOUT * Cout
                      + 2 * (int(w1_flat.size) + int(w2_flat.size))
                      + 4 * 2 * (Cmid + Cout) + 4 * LOUT)

    grid_spec = pltpu.PrefetchScalarGridSpec(
        num_scalar_prefetch=0,
        grid=(N,),
        in_specs=[
            pl.BlockSpec((1, C2, Lpad), lambda n: (n, 0, 0)),
            pl.BlockSpec((1, C1, Lpad), lambda n: (n, 0, 0)),
            pl.BlockSpec((1, LOUT), lambda n: (0, 0)),
            # TODO(synk): at production channel counts mark these constant-index
            # weight blocks pipeline_mode=pl.Buffered(1) to save dead VMEM (v7x).
            pl.BlockSpec((Cmid, 9 * Cin), lambda n: (0, 0)),
            pl.BlockSpec((Cmid, 1), lambda n: (0, 0)),
            pl.BlockSpec((Cmid, 1), lambda n: (0, 0)),
            pl.BlockSpec((Cout, 9 * Cmid), lambda n: (0, 0)),
            pl.BlockSpec((Cout, 1), lambda n: (0, 0)),
            pl.BlockSpec((Cout, 1), lambda n: (0, 0)),
        ],
        out_specs=pl.BlockSpec((1, Cout, LOUT), lambda n: (n, 0, 0)),
        scratch_shapes=[
            pltpu.VMEM((Cmid, OFF_ST + LOUT + OFF_ST), jnp.bfloat16),
            pltpu.VMEM((9 * Cin, LOUT), jnp.bfloat16),
            pltpu.VMEM((9 * Cmid, LOUT), jnp.bfloat16),
        ],
    )

    return pl.pallas_call(
        kernel,
        out_shape=jax.ShapeDtypeStruct((N, Cout, LOUT), jnp.float32),
        grid_spec=grid_spec,
        compiler_params=pltpu.CompilerParams(dimension_semantics=("parallel",)),
        cost_estimate=pl.CostEstimate(flops=int(flops), transcendentals=0,
                                      bytes_accessed=int(bytes_accessed)),
    )(x2p, x1p, colmask, w1_flat, s1, b1, w2_flat, s2, b2)


# --------------------------------------------------------------------------
# Glue: bilinear x2 upsample (align_corners=True), centering pad, conv padding
# --------------------------------------------------------------------------
def _interp_matrix(n_in, n_out):
    """Interpolation matrix M (n_out, n_in) for align_corners=True bilinear."""
    m = np.zeros((n_out, n_in), dtype=np.float32)
    for i in range(n_out):
        src = i * (n_in - 1) / (n_out - 1) if n_out > 1 else 0.0
        i0 = min(int(np.floor(src)), n_in - 1)
        i1 = min(i0 + 1, n_in - 1)
        f = src - i0
        m[i, i0] += 1.0 - f
        m[i, i1] += f
    return m


def _upsample2x(x):
    """Bilinear 2x upsample, align_corners=True (matches nn.Upsample)."""
    _, _, H1, W1 = x.shape
    Mh = jnp.asarray(_interp_matrix(H1, 2 * H1))
    Mw = jnp.asarray(_interp_matrix(W1, 2 * W1))
    y = jnp.einsum('oh,nchw->ncow', Mh, x)
    return jnp.einsum('pw,ncow->ncop', Mw, y)


def up_forward(x1, x2, params):
    """Mirror of Up.forward (bilinear=True).  x1, x2: NCHW float32."""
    N = x1.shape[0]
    x1u = _upsample2x(x1)
    dy = x2.shape[2] - x1u.shape[2]
    dx = x2.shape[3] - x1u.shape[3]
    x1c = jnp.pad(x1u, ((0, 0), (0, 0),
                        (dy // 2, dy - dy // 2),
                        (dx // 2, dx - dx // 2)))

    H, W = x2.shape[2], x2.shape[3]
    Wp = W + 2
    # Zero-pad 2 rows top/bottom (1 SAME-pad row + 1 slack row that keeps every
    # 3x3 tap lane-window in bounds) and 1 column left/right, flatten NCHW ->
    # (N, C, (H+4)*Wp), cast to bf16 (MXU input dtype; halves HBM/DMA bytes).
    pad = ((0, 0), (0, 0), (2, 2), (1, 1))
    x2p = jnp.pad(x2, pad).reshape(N, x2.shape[1], -1).astype(jnp.bfloat16)
    x1p = jnp.pad(x1c, pad).reshape(N, x1c.shape[1], -1).astype(jnp.bfloat16)

    # 1.0 on real columns, 0.0 on the 2 pad columns of each image row.
    row = np.zeros((Wp,), np.float32)
    row[1:W + 1] = 1.0
    colmask = jnp.asarray(np.tile(row, H)[None, :])

    yf = double_conv_pallas(x2p, x1p, colmask, H, W,
                            params['w1_flat'], params['s1'], params['b1'],
                            params['w2_flat'], params['s2'], params['b2'])
    # strip the 2 pad columns (padded-column layout -> NCHW)
    return yf.reshape(N, -1, H, Wp)[:, :, :, 1:W + 1]


# --------------------------------------------------------------------------
# Reference (plain JAX) for the DoubleConv part, used as a sanity check
# --------------------------------------------------------------------------
def _double_conv_ref(x_nhwc, w1_hwio, s1, b1, w2_hwio, s2, b2):
    dn = ('NHWC', 'HWIO', 'NHWC')
    prec = jax.lax.Precision.HIGHEST
    y = jax.lax.conv_general_dilated(x_nhwc, w1_hwio, (1, 1), 'SAME',
                                     dimension_numbers=dn, precision=prec)
    y = jnp.maximum(y * s1.reshape(1, 1, 1, -1) + b1.reshape(1, 1, 1, -1), 0.0)
    # the kernel stages conv1's output in bf16 before conv2
    y = y.astype(jnp.bfloat16).astype(jnp.float32)
    y = jax.lax.conv_general_dilated(y, w2_hwio, (1, 1), 'SAME',
                                     dimension_numbers=dn, precision=prec)
    y = jnp.maximum(y * s2.reshape(1, 1, 1, -1) + b2.reshape(1, 1, 1, -1), 0.0)
    return y


# --------------------------------------------------------------------------
def _make_params(key, in_channels, out_channels):
    """Synthetic parameters for Up(in_channels, out_channels, bilinear=True)."""
    mid = in_channels // 2
    ks = jax.random.split(key, 10)
    eps = 1e-5

    # PyTorch conv weights are (Cout, Cin, 3, 3).  The kernel consumes them in
    # bf16, pre-arranged im2col-style as (Cout_c, 9*Cin_c): column block
    # k = ky*3 + kx holds w[:, :, ky, kx].
    w1_pt = 0.1 * jax.random.normal(ks[0], (mid, in_channels, 3, 3), jnp.float32)
    w2_pt = 0.1 * jax.random.normal(ks[1], (out_channels, mid, 3, 3), jnp.float32)
    w1_bf = w1_pt.astype(jnp.bfloat16)
    w2_bf = w2_pt.astype(jnp.bfloat16)
    w1_flat = jnp.transpose(w1_bf, (0, 2, 3, 1)).reshape(mid, 9 * in_channels)
    w2_flat = jnp.transpose(w2_bf, (0, 2, 3, 1)).reshape(out_channels, 9 * mid)
    # f32 HWIO copies of the (bf16-rounded) weights for the reference conv.
    w1_hwio = jnp.transpose(w1_bf.astype(jnp.float32), (2, 3, 1, 0))
    w2_hwio = jnp.transpose(w2_bf.astype(jnp.float32), (2, 3, 1, 0))

    g1 = 1.0 + 0.1 * jax.random.normal(ks[2], (mid,), jnp.float32)
    be1 = 0.1 * jax.random.normal(ks[3], (mid,), jnp.float32)
    mu1 = 0.05 * jax.random.normal(ks[4], (mid,), jnp.float32)
    var1 = 1.0 + 0.1 * jnp.abs(jax.random.normal(ks[5], (mid,), jnp.float32))

    g2 = 1.0 + 0.1 * jax.random.normal(ks[6], (out_channels,), jnp.float32)
    be2 = 0.1 * jax.random.normal(ks[7], (out_channels,), jnp.float32)
    mu2 = 0.05 * jax.random.normal(ks[8], (out_channels,), jnp.float32)
    var2 = 1.0 + 0.1 * jnp.abs(jax.random.normal(ks[9], (out_channels,), jnp.float32))

    s1 = (g1 / jnp.sqrt(var1 + eps)).reshape(mid, 1)
    b1 = (be1 - mu1 * g1 / jnp.sqrt(var1 + eps)).reshape(mid, 1)
    s2 = (g2 / jnp.sqrt(var2 + eps)).reshape(out_channels, 1)
    b2 = (be2 - mu2 * g2 / jnp.sqrt(var2 + eps)).reshape(out_channels, 1)

    return dict(w1_flat=w1_flat, s1=s1, b1=b1, w2_flat=w2_flat, s2=s2, b2=b2,
                w1_hwio=w1_hwio, w2_hwio=w2_hwio)


if __name__ == "__main__":
    in_channels = 16       # channels of the concatenated tensor
    out_channels = 8

    key = jax.random.PRNGKey(0)
    kx1, kx2, kp = jax.random.split(key, 3)

    # x1 is the low-resolution feature map (gets upsampled 2x), x2 the skip.
    x1 = jax.random.normal(kx1, (2, in_channels // 2, 8, 8), jnp.float32)
    x2 = jax.random.normal(kx2, (2, in_channels // 2, 16, 16), jnp.float32)

    params = _make_params(kp, in_channels, out_channels)

    up = jax.jit(up_forward)
    out = jax.block_until_ready(up(x1, x2, params))
    assert out.shape == (2, out_channels, 16, 16), out.shape

    # sanity check of the Pallas DoubleConv against a plain-JAX reference
    x1u = _upsample2x(x1)
    xcat = jnp.concatenate([x2, x1u], axis=1)
    xcat = xcat.astype(jnp.bfloat16).astype(jnp.float32)   # kernel inputs are bf16
    x_nhwc = jnp.transpose(xcat, (0, 2, 3, 1))
    ref = _double_conv_ref(x_nhwc, params['w1_hwio'], params['s1'], params['b1'],
                           params['w2_hwio'], params['s2'], params['b2'])
    ref = jnp.transpose(ref, (0, 3, 1, 2))
    np.testing.assert_allclose(np.asarray(out), np.asarray(ref),
                               rtol=2e-2, atol=2e-2)

    print("KERNEL_OK")
</pallas_src>

<mosaic_0001>
module attributes {stable_mosaic.version = 11 : i64} {
  func.func @_double_conv_kernel(%arg0: i32, %arg1: memref<1x8x360xbf16, #tpu.memory_space<vmem>>, %arg2: memref<1x8x360xbf16, #tpu.memory_space<vmem>>, %arg3: memref<1x288xf32, #tpu.memory_space<vmem>>, %arg4: memref<8x144xbf16, #tpu.memory_space<vmem>>, %arg5: memref<8x1xf32, #tpu.memory_space<vmem>>, %arg6: memref<8x1xf32, #tpu.memory_space<vmem>>, %arg7: memref<8x72xbf16, #tpu.memory_space<vmem>>, %arg8: memref<8x1xf32, #tpu.memory_space<vmem>>, %arg9: memref<8x1xf32, #tpu.memory_space<vmem>>, %arg10: memref<1x8x288xf32, #tpu.memory_space<vmem>>, %arg11: memref<8x544xbf16, #tpu.memory_space<vmem>>, %arg12: memref<144x288xbf16, #tpu.memory_space<vmem>>, %arg13: memref<72x288xbf16, #tpu.memory_space<vmem>>) attributes {dimension_semantics = [#tpu.dimension_semantics<parallel>], iteration_bounds = array<i64: 2>, scalar_prefetch = 0 : i64, scratch_operands = 3 : i64, tpu.core_type = #tpu.core_type<tc>, window_params = [{transform_indices = @transform_0, window_bounds = array<i64: 1, 8, 360>}, {transform_indices = @transform_1, window_bounds = array<i64: 1, 8, 360>}, {pipeline_mode = #tpu.pipeline_mode<synchronous>, transform_indices = @transform_2, window_bounds = array<i64: 1, 288>}, {pipeline_mode = #tpu.pipeline_mode<synchronous>, transform_indices = @transform_3, window_bounds = array<i64: 8, 144>}, {pipeline_mode = #tpu.pipeline_mode<synchronous>, transform_indices = @transform_4, window_bounds = array<i64: 8, 1>}, {pipeline_mode = #tpu.pipeline_mode<synchronous>, transform_indices = @transform_5, window_bounds = array<i64: 8, 1>}, {pipeline_mode = #tpu.pipeline_mode<synchronous>, transform_indices = @transform_6, window_bounds = array<i64: 8, 72>}, {pipeline_mode = #tpu.pipeline_mode<synchronous>, transform_indices = @transform_7, window_bounds = array<i64: 8, 1>}, {pipeline_mode = #tpu.pipeline_mode<synchronous>, transform_indices = @transform_8, window_bounds = array<i64: 8, 1>}, {transform_indices = @transform_9, window_bounds = array<i64: 1, 8, 288>}]} {
    %c0 = arith.constant 0 : index
    %c0_0 = arith.constant 0 : index
    %c17 = arith.constant 17 : index
    %0 = vector.load %arg1[%c0, %c0_0, %c17] : memref<1x8x360xbf16, #tpu.memory_space<vmem>>, vector<1x8x288xbf16>
    %1 = vector.shape_cast %0 : vector<1x8x288xbf16> to vector<8x288xbf16>
    %c0_1 = arith.constant 0 : index
    %c0_2 = arith.constant 0 : index
    %2 = vector.load %arg12[%c0_1, %c0_2] : memref<144x288xbf16, #tpu.memory_space<vmem>>, vector<8x288xbf16>
    tpu.vector_store %arg12[%c0_1, %c0_2], %1 {strides = array<i32>} : memref<144x288xbf16, #tpu.memory_space<vmem>>, vector<8x288xbf16>,
    %c0_3 = arith.constant 0 : index
    %c0_4 = arith.constant 0 : index
    %c17_5 = arith.constant 17 : index
    %3 = vector.load %arg2[%c0_3, %c0_4, %c17_5] : memref<1x8x360xbf16, #tpu.memory_space<vmem>>, vector<1x8x288xbf16>
    %4 = vector.shape_cast %3 : vector<1x8x288xbf16> to vector<8x288xbf16>
    %c8 = arith.constant 8 : index
    %c0_6 = arith.constant 0 : index
    %5 = vector.load %arg12[%c8, %c0_6] : memref<144x288xbf16, #tpu.memory_space<vmem>>, vector<8x288xbf16>
    tpu.vector_store %arg12[%c8, %c0_6], %4 {strides = array<i32>} : memref<144x288xbf16, #tpu.memory_space<vmem>>, vector<8x288xbf16>,
    %c0_7 = arith.constant 0 : index
    %c0_8 = arith.constant 0 : index
    %c18 = arith.constant 18 : index
    %6 = vector.load %arg1[%c0_7, %c0_8, %c18] : memref<1x8x360xbf16, #tpu.memory_space<vmem>>, vector<1x8x288xbf16>
    %7 = vector.shape_cast %6 : vector<1x8x288xbf16> to vector<8x288xbf16>
    %c16 = arith.constant 16 : index
    %c0_9 = arith.constant 0 : index
    %8 = vector.load %arg12[%c16, %c0_9] : memref<144x288xbf16, #tpu.memory_space<vmem>>, vector<8x288xbf16>
    tpu.vector_store %arg12[%c16, %c0_9], %7 {strides = array<i32>} : memref<144x288xbf16, #tpu.memory_space<vmem>>, vector<8x288xbf16>,
    %c0_10 = arith.constant 0 : index
    %c0_11 = arith.constant 0 : index
    %c18_12 = arith.constant 18 : index
    %9 = vector.load %arg2[%c0_10, %c0_11, %c18_12] : memref<1x8x360xbf16, #tpu.memory_space<vmem>>, vector<1x8x288xbf16>
    %10 = vector.shape_cast %9 : vector<1x8x288xbf16> to vector<8x288xbf16>
    %c24 = arith.constant 24 : index
    %c0_13 = arith.constant 0 : index
    %11 = vector.load %arg12[%c24, %c0_13] : memref<144x288xbf16, #tpu.memory_space<vmem>>, vector<8x288xbf16>
    tpu.vector_store %arg12[%c24, %c0_13], %10 {strides = array<i32>} : memref<144x288xbf16, #tpu.memory_space<vmem>>, vector<8x288xbf16>,
    %c0_14 = arith.constant 0 : index
    %c0_15 = arith.constant 0 : index
    %c19 = arith.constant 19 : index
    %12 = vector.load %arg1[%c0_14, %c0_15, %c19] : memref<1x8x360xbf16, #tpu.memory_space<vmem>>, vector<1x8x288xbf16>
    %13 = vector.shape_cast %12 : vector<1x8x288xbf16> to vector<8x288xbf16>
    %c32 = arith.constant 32 : index
    %c0_16 = arith.constant 0 : index
    %14 = vector.load %arg12[%c32, %c0_16] : memref<144x288xbf16, #tpu.memory_space<vmem>>, vector<8x288xbf16>
    tpu.vector_store %arg12[%c32, %c0_16], %13 {strides = array<i32>} : memref<144x288xbf16, #tpu.memory_space<vmem>>, vector<8x288xbf16>,
    %c0_17 = arith.constant 0 : index
    %c0_18 = arith.constant 0 : index
    %c19_19 = arith.constant 19 : index
    %15 = vector.load %arg2[%c0_17, %c0_18, %c19_19] : memref<1x8x360xbf16, #tpu.memory_space<vmem>>, vector<1x8x288xbf16>
    %16 = vector.shape_cast %15 : vector<1x8x288xbf16> to vector<8x288xbf16>
    %c40 = arith.constant 40 : index
    %c0_20 = arith.constant 0 : index
    %17 = vector.load %arg12[%c40, %c0_20] : memref<144x288xbf16, #tpu.memory_space<vmem>>, vector<8x288xbf16>
    tpu.vector_store %arg12[%c40, %c0_20], %16 {strides = array<i32>} : memref<144x288xbf16, #tpu.memory_space<vmem>>, vector<8x288xbf16>,
    %c0_21 = arith.constant 0 : index
    %c0_22 = arith.constant 0 : index
    %c35 = arith.constant 35 : index
    %18 = vector.load %arg1[%c0_21, %c0_22, %c35] : memref<1x8x360xbf16, #tpu.memory_space<vmem>>, vector<1x8x288xbf16>
    %19 = vector.shape_cast %18 : vector<1x8x288xbf16> to vector<8x288xbf16>
    %c48 = arith.constant 48 : index
    %c0_23 = arith.constant 0 : index
    %20 = vector.load %arg12[%c48, %c0_23] : memref<144x288xbf16, #tpu.memory_space<vmem>>, vector<8x288xbf16>
    tpu.vector_store %arg12[%c48, %c0_23], %19 {strides = array<i32>} : memref<144x288xbf16, #tpu.memory_space<vmem>>, vector<8x288xbf16>,
    %c0_24 = arith.constant 0 : index
    %c0_25 = arith.constant 0 : index
    %c35_26 = arith.constant 35 : index
    %21 = vector.load %arg2[%c0_24, %c0_25, %c35_26] : memref<1x8x360xbf16, #tpu.memory_space<vmem>>, vector<1x8x288xbf16>
    %22 = vector.shape_cast %21 : vector<1x8x288xbf16> to vector<8x288xbf16>
    %c56 = arith.constant 56 : index
    %c0_27 = arith.constant 0 : index
    %23 = vector.load %arg12[%c56, %c0_27] : memref<144x288xbf16, #tpu.memory_space<vmem>>, vector<8x288xbf16>
    tpu.vector_store %arg12[%c56, %c0_27], %22 {strides = array<i32>} : memref<144x288xbf16, #tpu.memory_space<vmem>>, vector<8x288xbf16>,
    %c0_28 = arith.constant 0 : index
    %c0_29 = arith.constant 0 : index
    %c36 = arith.constant 36 : index
    %24 = vector.load %arg1[%c0_28, %c0_29, %c36] : memref<1x8x360xbf16, #tpu.memory_space<vmem>>, vector<1x8x288xbf16>
    %25 = vector.shape_cast %24 : vector<1x8x288xbf16> to vector<8x288xbf16>
    %c64 = arith.constant 64 : index
    %c0_30 = arith.constant 0 : index
    %26 = vector.load %arg12[%c64, %c0_30] : memref<144x288xbf16, #tpu.memory_space<vmem>>, vector<8x288xbf16>
    tpu.vector_store %arg12[%c64, %c0_30], %25 {strides = array<i32>} : memref<144x288xbf16, #tpu.memory_space<vmem>>, vector<8x288xbf16>,
    %c0_31 = arith.constant 0 : index
    %c0_32 = arith.constant 0 : index
    %c36_33 = arith.constant 36 : index
    %27 = vector.load %arg2[%c0_31, %c0_32, %c36_33] : memref<1x8x360xbf16, #tpu.memory_space<vmem>>, vector<1x8x288xbf16>
    %28 = vector.shape_cast %27 : vector<1x8x288xbf16> to vector<8x288xbf16>
    %c72 = arith.constant 72 : index
    %c0_34 = arith.constant 0 : index
    %29 = vector.load %arg12[%c72, %c0_34] : memref<144x288xbf16, #tpu.memory_space<vmem>>, vector<8x288xbf16>
    tpu.vector_store %arg12[%c72, %c0_34], %28 {strides = array<i32>} : memref<144x288xbf16, #tpu.memory_space<vmem>>, vector<8x288xbf16>,
    %c0_35 = arith.constant 0 : index
    %c0_36 = arith.constant 0 : index
    %c37 = arith.constant 37 : index
    %30 = vector.load %arg1[%c0_35, %c0_36, %c37] : memref<1x8x360xbf16, #tpu.memory_space<vmem>>, vector<1x8x288xbf16>
    %31 = vector.shape_cast %30 : vector<1x8x288xbf16> to vector<8x288xbf16>
    %c80 = arith.constant 80 : index
    %c0_37 = arith.constant 0 : index
    %32 = vector.load %arg12[%c80, %c0_37] : memref<144x288xbf16, #tpu.memory_space<vmem>>, vector<8x288xbf16>
    tpu.vector_store %arg12[%c80, %c0_37], %31 {strides = array<i32>} : memref<144x288xbf16, #tpu.memory_space<vmem>>, vector<8x288xbf16>,
    %c0_38 = arith.constant 0 : index
    %c0_39 = arith.constant 0 : index
    %c37_40 = arith.constant 37 : index
    %33 = vector.load %arg2[%c0_38, %c0_39, %c37_40] : memref<1x8x360xbf16, #tpu.memory_space<vmem>>, vector<1x8x288xbf16>
    %34 = vector.shape_cast %33 : vector<1x8x288xbf16> to vector<8x288xbf16>
    %c88 = arith.constant 88 : index
    %c0_41 = arith.constant 0 : index
    %35 = vector.load %arg12[%c88, %c0_41] : memref<144x288xbf16, #tpu.memory_space<vmem>>, vector<8x288xbf16>
    tpu.vector_store %arg12[%c88, %c0_41], %34 {strides = array<i32>} : memref<144x288xbf16, #tpu.memory_space<vmem>>, vector<8x288xbf16>,
    %c0_42 = arith.constant 0 : index
    %c0_43 = arith.constant 0 : index
    %c53 = arith.constant 53 : index
    %36 = vector.load %arg1[%c0_42, %c0_43, %c53] : memref<1x8x360xbf16, #tpu.memory_space<vmem>>, vector<1x8x288xbf16>
    %37 = vector.shape_cast %36 : vector<1x8x288xbf16> to vector<8x288xbf16>
    %c96 = arith.constant 96 : index
    %c0_44 = arith.constant 0 : index
    %38 = vector.load %arg12[%c96, %c0_44] : memref<144x288xbf16, #tpu.memory_space<vmem>>, vector<8x288xbf16>
    tpu.vector_store %arg12[%c96, %c0_44], %37 {strides = array<i32>} : memref<144x288xbf16, #tpu.memory_space<vmem>>, vector<8x288xbf16>,
    %c0_45 = arith.constant 0 : index
    %c0_46 = arith.constant 0 : index
    %c53_47 = arith.constant 53 : index
    %39 = vector.load %arg2[%c0_45, %c0_46, %c53_47] : memref<1x8x360xbf16, #tpu.memory_space<vmem>>, vector<1x8x288xbf16>
    %40 = vector.shape_cast %39 : vector<1x8x288xbf16> to vector<8x288xbf16>
    %c104 = arith.constant 104 : index
    %c0_48 = arith.constant 0 : index
    %41 = vector.load %arg12[%c104, %c0_48] : memref<144x288xbf16, #tpu.memory_space<vmem>>, vector<8x288xbf16>
    tpu.vector_store %arg12[%c104, %c0_48], %40 {strides = array<i32>} : memref<144x288xbf16, #tpu.memory_space<vmem>>, vector<8x288xbf16>,
    %c0_49 = arith.constant 0 : index
    %c0_50 = arith.constant 0 : index
    %c54 = arith.constant 54 : index
    %42 = vector.load %arg1[%c0_49, %c0_50, %c54] : memref<1x8x360xbf16, #tpu.memory_space<vmem>>, vector<1x8x288xbf16>
    %43 = vector.shape_cast %42 : vector<1x8x288xbf16> to vector<8x288xbf16>
    %c112 = arith.constant 112 : index
    %c0_51 = arith.constant 0 : index
    %44 = vector.load %arg12[%c112, %c0_51] : memref<144x288xbf16, #tpu.memory_space<vmem>>, vector<8x288xbf16>
    tpu.vector_store %arg12[%c112, %c0_51], %43 {strides = array<i32>} : memref<144x288xbf16, #tpu.memory_space<vmem>>, vector<8x288xbf16>,
    %c0_52 = arith.constant 0 : index
    %c0_53 = arith.constant 0 : index
    %c54_54 = arith.constant 54 : index
    %45 = vector.load %arg2[%c0_52, %c0_53, %c54_54] : memref<1x8x360xbf16, #tpu.memory_space<vmem>>, vector<1x8x288xbf16>
    %46 = vector.shape_cast %45 : vector<1x8x288xbf16> to vector<8x288xbf16>
    %c120 = arith.constant 120 : index
    %c0_55 = arith.constant 0 : index
    %47 = vector.load %arg12[%c120, %c0_55] : memref<144x288xbf16, #tpu.memory_space<vmem>>, vector<8x288xbf16>
    tpu.vector_store %arg12[%c120, %c0_55], %46 {strides = array<i32>} : memref<144x288xbf16, #tpu.memory_space<vmem>>, vector<8x288xbf16>,
    %c0_56 = arith.constant 0 : index
    %c0_57 = arith.constant 0 : index
    %c55 = arith.constant 55 : index
    %48 = vector.load %arg1[%c0_56, %c0_57, %c55] : memref<1x8x360xbf16, #tpu.memory_space<vmem>>, vector<1x8x288xbf16>
    %49 = vector.shape_cast %48 : vector<1x8x288xbf16> to vector<8x288xbf16>
    %c128 = arith.constant 128 : index
    %c0_58 = arith.constant 0 : index
    %50 = vector.load %arg12[%c128, %c0_58] : memref<144x288xbf16, #tpu.memory_space<vmem>>, vector<8x288xbf16>
    tpu.vector_store %arg12[%c128, %c0_58], %49 {strides = array<i32>} : memref<144x288xbf16, #tpu.memory_space<vmem>>, vector<8x288xbf16>,
    %c0_59 = arith.constant 0 : index
    %c0_60 = arith.constant 0 : index
    %c55_61 = arith.constant 55 : index
    %51 = vector.load %arg2[%c0_59, %c0_60, %c55_61] : memref<1x8x360xbf16, #tpu.memory_space<vmem>>, vector<1x8x288xbf16>
    %52 = vector.shape_cast %51 : vector<1x8x288xbf16> to vector<8x288xbf16>
    %c136 = arith.constant 136 : index
    %c0_62 = arith.constant 0 : index
    %53 = vector.load %arg12[%c136, %c0_62] : memref<144x288xbf16, #tpu.memory_space<vmem>>, vector<8x288xbf16>
    tpu.vector_store %arg12[%c136, %c0_62], %52 {strides = array<i32>} : memref<144x288xbf16, #tpu.memory_space<vmem>>, vector<8x288xbf16>,
    %c0_63 = arith.constant 0 : index
    %c0_64 = arith.constant 0 : index
    %54 = vector.load %arg4[%c0_63, %c0_64] : memref<8x144xbf16, #tpu.memory_space<vmem>>, vector<8x144xbf16>
    %c0_65 = arith.constant 0 : index
    %c0_66 = arith.constant 0 : index
    %55 = vector.load %arg12[%c0_65, %c0_66] : memref<144x288xbf16, #tpu.memory_space<vmem>>, vector<144x288xbf16>
    %cst = arith.constant dense<0.000000e+00> : vector<8x288xf32>
    %56 = tpu.matmul %54, %55, %cst {dimension_numbers = #tpu.dot_dimension_numbers<[1], [0], [0], [1], [0, 0, 1, 1], [], []>} : vector<8x144xbf16>, vector<144x288xbf16>, vector<8x288xf32> -> vector<8x288xf32>
    %c0_67 = arith.constant 0 : index
    %c0_68 = arith.constant 0 : index
    %57 = vector.load %arg5[%c0_67, %c0_68] : memref<8x1xf32, #tpu.memory_space<vmem>>, vector<8x1xf32>
    %58 = vector.broadcast %57 : vector<8x1xf32> to vector<8x288xf32>
    %59 = arith.mulf %56, %58 : vector<8x288xf32>
    %c0_69 = arith.constant 0 : index
    %c0_70 = arith.constant 0 : index
    %60 = vector.load %arg6[%c0_69, %c0_70] : memref<8x1xf32, #tpu.memory_space<vmem>>, vector<8x1xf32>
    %61 = vector.broadcast %60 : vector<8x1xf32> to vector<8x288xf32>
    %62 = arith.addf %59, %61 : vector<8x288xf32>
    %cst_71 = arith.constant 0.000000e+00 : f32
    %63 = vector.broadcast %cst_71 : f32 to vector<8x288xf32>
    %64 = arith.maximumf %62, %63 : vector<8x288xf32>
    %c0_72 = arith.constant 0 : index
    %c0_73 = arith.constant 0 : index
    %65 = vector.load %arg3[%c0_72, %c0_73] : memref<1x288xf32, #tpu.memory_space<vmem>>, vector<1x288xf32>
    %66 = vector.broadcast %65 : vector<1x288xf32> to vector<8x288xf32>
    %67 = arith.mulf %64, %66 : vector<8x288xf32>
    %cst_74 = arith.constant 0.000000e+00 : bf16
    %68 = vector.broadcast %cst_74 : bf16 to vector<8x19xbf16>
    %c0_75 = arith.constant 0 : index
    %c109 = arith.constant 109 : index
    %69 = vector.load %arg11[%c0_75, %c109] : memref<8x544xbf16, #tpu.memory_space<vmem>>, vector<8x19xbf16>
    tpu.vector_store %arg11[%c0_75, %c109], %68 {strides = array<i32>} : memref<8x544xbf16, #tpu.memory_space<vmem>>, vector<8x19xbf16>,
    %cst_76 = arith.constant 0.000000e+00 : bf16
    %70 = vector.broadcast %cst_76 : bf16 to vector<8x19xbf16>
    %c0_77 = arith.constant 0 : index
    %c416 = arith.constant 416 : index
    %71 = vector.load %arg11[%c0_77, %c416] : memref<8x544xbf16, #tpu.memory_space<vmem>>, vector<8x19xbf16>
    tpu.vector_store %arg11[%c0_77, %c416], %70 {strides = array<i32>} : memref<8x544xbf16, #tpu.memory_space<vmem>>, vector<8x19xbf16>,
    %72 = arith.truncf %67 : vector<8x288xf32> to vector<8x288xbf16>
    %c0_78 = arith.constant 0 : index
    %c128_79 = arith.constant 128 : index
    %73 = vector.load %arg11[%c0_78, %c128_79] : memref<8x544xbf16, #tpu.memory_space<vmem>>, vector<8x288xbf16>
    tpu.vector_store %arg11[%c0_78, %c128_79], %72 {strides = array<i32>} : memref<8x544xbf16, #tpu.memory_space<vmem>>, vector<8x288xbf16>,
    %c0_80 = arith.constant 0 : index
    %c109_81 = arith.constant 109 : index
    %74 = vector.load %arg11[%c0_80, %c109_81] : memref<8x544xbf16, #tpu.memory_space<vmem>>, vector<8x288xbf16>
    %c0_82 = arith.constant 0 : index
    %c0_83 = arith.constant 0 : index
    %75 = vector.load %arg13[%c0_82, %c0_83] : memref<72x288xbf16, #tpu.memory_space<vmem>>, vector<8x288xbf16>
    tpu.vector_store %arg13[%c0_82, %c0_83], %74 {strides = array<i32>} : memref<72x288xbf16, #tpu.memory_space<vmem>>, vector<8x288xbf16>,
    %c0_84 = arith.constant 0 : index
    %c110 = arith.constant 110 : index
    %76 = vector.load %arg11[%c0_84, %c110] : memref<8x544xbf16, #tpu.memory_space<vmem>>, vector<8x288xbf16>
    %c8_85 = arith.constant 8 : index
    %c0_86 = arith.constant 0 : index
    %77 = vector.load %arg13[%c8_85, %c0_86] : memref<72x288xbf16, #tpu.memory_space<vmem>>, vector<8x288xbf16>
    tpu.vector_store %arg13[%c8_85, %c0_86], %76 {strides = array<i32>} : memref<72x288xbf16, #tpu.memory_space<vmem>>, vector<8x288xbf16>,
    %c0_87 = arith.constant 0 : index
    %c111 = arith.constant 111 : index
    %78 = vector.load %arg11[%c0_87, %c111] : memref<8x544xbf16, #tpu.memory_space<vmem>>, vector<8x288xbf16>
    %c16_88 = arith.constant 16 : index
    %c0_89 = arith.constant 0 : index
    %79 = vector.load %arg13[%c16_88, %c0_89] : memref<72x288xbf16, #tpu.memory_space<vmem>>, vector<8x288xbf16>
    tpu.vector_store %arg13[%c16_88, %c0_89], %78 {strides = array<i32>} : memref<72x288xbf16, #tpu.memory_space<vmem>>, vector<8x288xbf16>,
    %c0_90 = arith.constant 0 : index
    %c127 = arith.constant 127 : index
    %80 = vector.load %arg11[%c0_90, %c127] : memref<8x544xbf16, #tpu.memory_space<vmem>>, vector<8x288xbf16>
    %c24_91 = arith.constant 24 : index
    %c0_92 = arith.constant 0 : index
    %81 = vector.load %arg13[%c24_91, %c0_92] : memref<72x288xbf16, #tpu.memory_space<vmem>>, vector<8x288xbf16>
    tpu.vector_store %arg13[%c24_91, %c0_92], %80 {strides = array<i32>} : memref<72x288xbf16, #tpu.memory_space<vmem>>, vector<8x288xbf16>,
    %c0_93 = arith.constant 0 : index
    %c128_94 = arith.constant 128 : index
    %82 = vector.load %arg11[%c0_93, %c128_94] : memref<8x544xbf16, #tpu.memory_space<vmem>>, vector<8x288xbf16>
    %c32_95 = arith.constant 32 : index
    %c0_96 = arith.constant 0 : index
    %83 = vector.load %arg13[%c32_95, %c0_96] : memref<72x288xbf16, #tpu.memory_space<vmem>>, vector<8x288xbf16>
    tpu.vector_store %arg13[%c32_95, %c0_96], %82 {strides = array<i32>} : memref<72x288xbf16, #tpu.memory_space<vmem>>, vector<8x288xbf16>,
    %c0_97 = arith.constant 0 : index
    %c129 = arith.constant 129 : index
    %84 = vector.load %arg11[%c0_97, %c129] : memref<8x544xbf16, #tpu.memory_space<vmem>>, vector<8x288xbf16>
    %c40_98 = arith.constant 40 : index
    %c0_99 = arith.constant 0 : index
    %85 = vector.load %arg13[%c40_98, %c0_99] : memref<72x288xbf16, #tpu.memory_space<vmem>>, vector<8x288xbf16>
    tpu.vector_store %arg13[%c40_98, %c0_99], %84 {strides = array<i32>} : memref<72x288xbf16, #tpu.memory_space<vmem>>, vector<8x288xbf16>,
    %c0_100 = arith.constant 0 : index
    %c145 = arith.constant 145 : index
    %86 = vector.load %arg11[%c0_100, %c145] : memref<8x544xbf16, #tpu.memory_space<vmem>>, vector<8x288xbf16>
    %c48_101 = arith.constant 48 : index
    %c0_102 = arith.constant 0 : index
    %87 = vector.load %arg13[%c48_101, %c0_102] : memref<72x288xbf16, #tpu.memory_space<vmem>>, vector<8x288xbf16>
    tpu.vector_store %arg13[%c48_101, %c0_102], %86 {strides = array<i32>} : memref<72x288xbf16, #tpu.memory_space<vmem>>, vector<8x288xbf16>,
    %c0_103 = arith.constant 0 : index
    %c146 = arith.constant 146 : index
    %88 = vector.load %arg11[%c0_103, %c146] : memref<8x544xbf16, #tpu.memory_space<vmem>>, vector<8x288xbf16>
    %c56_104 = arith.constant 56 : index
    %c0_105 = arith.constant 0 : index
    %89 = vector.load %arg13[%c56_104, %c0_105] : memref<72x288xbf16, #tpu.memory_space<vmem>>, vector<8x288xbf16>
    tpu.vector_store %arg13[%c56_104, %c0_105], %88 {strides = array<i32>} : memref<72x288xbf16, #tpu.memory_space<vmem>>, vector<8x288xbf16>,
    %c0_106 = arith.constant 0 : index
    %c147 = arith.constant 147 : index
    %90 = vector.load %arg11[%c0_106, %c147] : memref<8x544xbf16, #tpu.memory_space<vmem>>, vector<8x288xbf16>
    %c64_107 = arith.constant 64 : index
    %c0_108 = arith.constant 0 : index
    %91 = vector.load %arg13[%c64_107, %c0_108] : memref<72x288xbf16, #tpu.memory_space<vmem>>, vector<8x288xbf16>
    tpu.vector_store %arg13[%c64_107, %c0_108], %90 {strides = array<i32>} : memref<72x288xbf16, #tpu.memory_space<vmem>>, vector<8x288xbf16>,
    %c0_109 = arith.constant 0 : index
    %c0_110 = arith.constant 0 : index
    %92 = vector.load %arg7[%c0_109, %c0_110] : memref<8x72xbf16, #tpu.memory_space<vmem>>, vector<8x72xbf16>
    %c0_111 = arith.constant 0 : index
    %c0_112 = arith.constant 0 : index
    %93 = vector.load %arg13[%c0_111, %c0_112] : memref<72x288xbf16, #tpu.memory_space<vmem>>, vector<72x288xbf16>
    %cst_113 = arith.constant dense<0.000000e+00> : vector<8x288xf32>
    %94 = tpu.matmul %92, %93, %cst_113 {dimension_numbers = #tpu.dot_dimension_numbers<[1], [0], [0], [1], [0, 0, 1, 1], [], []>} : vector<8x72xbf16>, vector<72x288xbf16>, vector<8x288xf32> -> vector<8x288xf32>
    %c0_114 = arith.constant 0 : index
    %c0_115 = arith.constant 0 : index
    %95 = vector.load %arg8[%c0_114, %c0_115] : memref<8x1xf32, #tpu.memory_space<vmem>>, vector<8x1xf32>
    %96 = vector.broadcast %95 : vector<8x1xf32> to vector<8x288xf32>
    %97 = arith.mulf %94, %96 : vector<8x288xf32>
    %c0_116 = arith.constant 0 : index
    %c0_117 = arith.constant 0 : index
    %98 = vector.load %arg9[%c0_116, %c0_117] : memref<8x1xf32, #tpu.memory_space<vmem>>, vector<8x1xf32>
    %99 = vector.broadcast %98 : vector<8x1xf32> to vector<8x288xf32>
    %100 = arith.addf %97, %99 : vector<8x288xf32>
    %cst_118 = arith.constant 0.000000e+00 : f32
    %101 = vector.broadcast %cst_118 : f32 to vector<8x288xf32>
    %102 = arith.maximumf %100, %101 : vector<8x288xf32>
    %c0_119 = arith.constant 0 : index
    %c0_120 = arith.constant 0 : index
    %c0_121 = arith.constant 0 : index
    %103 = vector.load %arg10[%c0_119, %c0_120, %c0_121] : memref<1x8x288xf32, #tpu.memory_space<vmem>>, vector<1x8x288xf32>
    %104 = vector.shape_cast %103 : vector<1x8x288xf32> to vector<8x288xf32>
    %105 = vector.shape_cast %102 : vector<8x288xf32> to vector<1x8x288xf32>
    tpu.vector_store %arg10[%c0_119, %c0_120, %c0_121], %105 {strides = array<i32>} : memref<1x8x288xf32, #tpu.memory_space<vmem>>, vector<1x8x288xf32>,
    return
  }
  func.func @transform_0(%arg0: i32) -> (i32, i32, i32) {
    %c0_i32 = arith.constant 0 : i32
    %c0_i32_0 = arith.constant 0 : i32
    %c0_i32_1 = arith.constant 0 : i32
    return %arg0, %c0_i32, %c0_i32_0 : i32, i32, i32
  }
  func.func @transform_1(%arg0: i32) -> (i32, i32, i32) {
    %c0_i32 = arith.constant 0 : i32
    %c0_i32_0 = arith.constant 0 : i32
    %c0_i32_1 = arith.constant 0 : i32
    return %arg0, %c0_i32, %c0_i32_0 : i32, i32, i32
  }
  func.func @transform_2(%arg0: i32) -> (i32, i32) {
    %c0_i32 = arith.constant 0 : i32
    %c0_i32_0 = arith.constant 0 : i32
    %c0_i32_1 = arith.constant 0 : i32
    return %c0_i32, %c0_i32_0 : i32, i32
  }
  func.func @transform_3(%arg0: i32) -> (i32, i32) {
    %c0_i32 = arith.constant 0 : i32
    %c0_i32_0 = arith.constant 0 : i32
    %c0_i32_1 = arith.constant 0 : i32
    return %c0_i32, %c0_i32_0 : i32, i32
  }
  func.func @transform_4(%arg0: i32) -> (i32, i32) {
    %c0_i32 = arith.constant 0 : i32
    %c0_i32_0 = arith.constant 0 : i32
    %c0_i32_1 = arith.constant 0 : i32
    return %c0_i32, %c0_i32_0 : i32, i32
  }
  func.func @transform_5(%arg0: i32) -> (i32, i32) {
    %c0_i32 = arith.constant 0 : i32
    %c0_i32_0 = arith.constant 0 : i32
    %c0_i32_1 = arith.constant 0 : i32
    return %c0_i32, %c0_i32_0 : i32, i32
  }
  func.func @transform_6(%arg0: i32) -> (i32, i32) {
    %c0_i32 = arith.constant 0 : i32
    %c0_i32_0 = arith.constant 0 : i32
    %c0_i32_1 = arith.constant 0 : i32
    return %c0_i32, %c0_i32_0 : i32, i32
  }
  func.func @transform_7(%arg0: i32) -> (i32, i32) {
    %c0_i32 = arith.constant 0 : i32
    %c0_i32_0 = arith.constant 0 : i32
    %c0_i32_1 = arith.constant 0 : i32
    return %c0_i32, %c0_i32_0 : i32, i32
  }
  func.func @transform_8(%arg0: i32) -> (i32, i32) {
    %c0_i32 = arith.constant 0 : i32
    %c0_i32_0 = arith.constant 0 : i32
    %c0_i32_1 = arith.constant 0 : i32
    return %c0_i32, %c0_i32_0 : i32, i32
  }
  func.func @transform_9(%arg0: i32) -> (i32, i32, i32) {
    %c0_i32 = arith.constant 0 : i32
    %c0_i32_0 = arith.constant 0 : i32
    %c0_i32_1 = arith.constant 0 : i32
    return %arg0, %c0_i32, %c0_i32_0 : i32, i32, i32
  }
}

</mosaic_0001>

<llo_original>
// kernel: up_forward.1
$region0: #{up_forward.1}
  #allocation0 [shape = 'u32[]', space=smem, size = 0x4, offset = 0x4, fixed_abs, tag = 'smem constant byte address 0x4 - core index']
  #allocation1 [shape = 'u32[144,128]{1,0:T(1,128)}', space=vmem, size = 0x12000, scoped, tag = 'internal scratch']
  #allocation2 [shape = 'bf16[8,544]{1,0:T(8,128)(2,1)}', space=vmem, size = 0x2800, scoped, tag = 'scratch operand']
  #allocation3 [shape = 'bf16[144,288]{1,0:T(8,128)(2,1)}', space=vmem, size = 0x1b000, scoped, tag = 'scratch operand']
  #allocation4 [shape = 'bf16[72,288]{1,0:T(8,128)(2,1)}', space=vmem, size = 0xd800, scoped, tag = 'scratch operand']
  %s0 = inlined_call_operand.vmem [shape: bf16[2,8,360], index: 0, kind: input, shape index: {}]
  %s1 = inlined_call_operand.vmem [shape: bf16[2,8,360], index: 1, kind: input, shape index: {}]
  %s2 = inlined_call_operand.vmem [shape: f32[1,288], index: 2, kind: input, shape index: {}]
  %s3 = inlined_call_operand.vmem [shape: bf16[8,144], index: 3, kind: input, shape index: {}]
  %s4 = inlined_call_operand.vmem [shape: f32[8,1], index: 4, kind: input, shape index: {}]
  %s5 = inlined_call_operand.vmem [shape: f32[8,1], index: 5, kind: input, shape index: {}]
  %s6 = inlined_call_operand.vmem [shape: bf16[8,72], index: 6, kind: input, shape index: {}]
  %s7 = inlined_call_operand.vmem [shape: f32[8,1], index: 7, kind: input, shape index: {}]
  %s8 = inlined_call_operand.vmem [shape: f32[8,1], index: 8, kind: input, shape index: {}]
  %s9 = inlined_call_operand.vmem [shape: f32[2,8,288], index: 9, kind: output, shape index: {}]
  %s10 = sld [smem:[#allocation0]]
  $region69: #{up_forward.1} parent=0
    _
  %s12 = ssub.s32 1, %s10
  %s13 = scalar_select 0, %s12, %s10
  loop: start=0, step=1, limit=4
  $region2: #{up_forward.1} parent=0 // loop_pre_header
    _
  $region3: #{up_forward.1} parent=0 // loop_header
    %s15 = sphi 0, %s19
    %p16 = scmp.ge.s32.totalorder %s15, 4
    %s25 = sphi 0, %s27
    %s28 = sphi 0, %s25
    %s29 = sphi 0, %s28
    %s45 = sphi 0, %s29
    %s51 = sphi 0, %s53
    %s54 = sphi 0, %s51
    %s55 = sphi 0, %s54
    %s71 = sphi 0, %s55
    %s75 = sphi 0, %s75
    %s77 = sphi 0, %s75
    %s78 = sphi 0, %s77
    %s92 = sphi 0, %s78
    %s96 = sphi 0, %s96
    %s98 = sphi 0, %s96
    %s99 = sphi 0, %s98
    %s113 = sphi 0, %s99
    %s117 = sphi 0, %s117
    %s119 = sphi 0, %s117
    %s120 = sphi 0, %s119
    %s134 = sphi 0, %s120
    %s138 = sphi 0, %s138
    %s140 = sphi 0, %s138
    %s141 = sphi 0, %s140
    %s155 = sphi 0, %s141
    %s159 = sphi 0, %s159
    %s161 = sphi 0, %s159
    %s162 = sphi 0, %s161
    %s176 = sphi 0, %s162
    %s180 = sphi 0, %s180
    %s182 = sphi 0, %s180
    %s183 = sphi 0, %s182
    %s197 = sphi 0, %s183
    %s201 = sphi 0, %s201
    %s203 = sphi 0, %s201
    %s204 = sphi 0, %s203
    %s218 = sphi 0, %s204
    %s224 = sphi 0, %s226
    %s227 = sphi 0, %s224
    %s228 = sphi 0, %s227
    %s244 = sphi 0, %s228
  $region4: #{up_forward.1} parent=0 // loop_header_branch
    %18 = sbr.rel (%p16) target = $region8
  $region5: #{up_forward.1} parent=0 // loop_body
    %s20 = ssub.s32 %s15, 1
    %s21 = ssub.s32 %s15, 2
    %s22 = sadd.s32 %s15, 1
    %s23 = ssub.s32 %s15, %s22
    %p24 = scmp.eq.s32.totalorder %s23, 0
    %s26 = sadd.s32 %s25, 1
    %s27 = scalar_select %p24, %s25, %s26
    %p30 = pneg %p24
    %p31 = scmp.eq.s32.totalorder %s15, 1
    %p32 = por %p30, %p31
    %p33 = scmp.ne.s32.totalorder %s25, %s28
    %p34 = scmp.eq.s32.totalorder %s15, 0
    %p35 = por %p33, %p34
    %p36 = scmp.ne.s32.totalorder %s25, %s28
    %p37 = scmp.eq.s32.totalorder %s20, 1
    %p38 = por %p36, %p37
    %p39 = scmp.ne.s32.totalorder %s28, %s29
    %p40 = scmp.eq.s32.totalorder %s20, 0
    %p41 = por %p39, %p40
    %p42 = scmp.ne.s32.totalorder %s28, %s29
    %p43 = scmp.eq.s32.totalorder %s21, 1
    %p44 = por %p42, %p43
    %p46 = scmp.ne.s32.totalorder %s29, %s45
    %p47 = scmp.eq.s32.totalorder %s21, 0
    %p48 = por %p46, %p47
    %s49 = ssub.s32 %s15, %s22
    %p50 = scmp.eq.s32.totalorder %s49, 0
    %s52 = sadd.s32 %s51, 1
    %s53 = scalar_select %p50, %s51, %s52
    %p56 = pneg %p50
    %p57 = scmp.eq.s32.totalorder %s15, 1
    %p58 = por %p56, %p57
    %p59 = scmp.ne.s32.totalorder %s51, %s54
    %p60 = scmp.eq.s32.totalorder %s15, 0
    %p61 = por %p59, %p60
    %p62 = scmp.ne.s32.totalorder %s51, %s54
    %p63 = scmp.eq.s32.totalorder %s20, 1
    %p64 = por %p62, %p63
    %p65 = scmp.ne.s32.totalorder %s54, %s55
    %p66 = scmp.eq.s32.totalorder %s20, 0
    %p67 = por %p65, %p66
    %p68 = scmp.ne.s32.totalorder %s54, %s55
    %p69 = scmp.eq.s32.totalorder %s21, 1
    %p70 = por %p68, %p69
    %p72 = scmp.ne.s32.totalorder %s55, %s71
    %p73 = scmp.eq.s32.totalorder %s21, 0
    %p74 = por %p72, %p73
    %s76 = sadd.s32 %s75, 1
    %p79 = scmp.eq.s32.totalorder %s15, 1
    %p80 = scmp.ne.s32.totalorder %s75, %s77
    %p81 = scmp.eq.s32.totalorder %s15, 0
    %p82 = por %p80, %p81
    %p83 = scmp.ne.s32.totalorder %s75, %s77
    %p84 = scmp.eq.s32.totalorder %s20, 1
    %p85 = por %p83, %p84
    %p86 = scmp.ne.s32.totalorder %s77, %s78
    %p87 = scmp.eq.s32.totalorder %s20, 0
    %p88 = por %p86, %p87
    %p89 = scmp.ne.s32.totalorder %s77, %s78
    %p90 = scmp.eq.s32.totalorder %s21, 1
    %p91 = por %p89, %p90
    %p93 = scmp.ne.s32.totalorder %s78, %s92
    %p94 = scmp.eq.s32.totalorder %s21, 0
    %p95 = por %p93, %p94
    %s97 = sadd.s32 %s96, 1
    %p100 = scmp.eq.s32.totalorder %s15, 1
    %p101 = scmp.ne.s32.totalorder %s96, %s98
    %p102 = scmp.eq.s32.totalorder %s15, 0
    %p103 = por %p101, %p102
    %p104 = scmp.ne.s32.totalorder %s96, %s98
    %p105 = scmp.eq.s32.totalorder %s20, 1
    %p106 = por %p104, %p105
    %p107 = scmp.ne.s32.totalorder %s98, %s99
    %p108 = scmp.eq.s32.totalorder %s20, 0
    %p109 = por %p107, %p108
    %p110 = scmp.ne.s32.totalorder %s98, %s99
    %p111 = scmp.eq.s32.totalorder %s21, 1
    %p112 = por %p110, %p111
    %p114 = scmp.ne.s32.totalorder %s99, %s113
    %p115 = scmp.eq.s32.totalorder %s21, 0
    %p116 = por %p114, %p115
    %s118 = sadd.s32 %s117, 1
    %p121 = scmp.eq.s32.totalorder %s15, 1
    %p122 = scmp.ne.s32.totalorder %s117, %s119
    %p123 = scmp.eq.s32.totalorder %s15, 0
    %p124 = por %p122, %p123
    %p125 = scmp.ne.s32.totalorder %s117, %s119
    %p126 = scmp.eq.s32.totalorder %s20, 1
    %p127 = por %p125, %p126
    %p128 = scmp.ne.s32.totalorder %s119, %s120
    %p129 = scmp.eq.s32.totalorder %s20, 0
    %p130 = por %p128, %p129
    %p131 = scmp.ne.s32.totalorder %s119, %s120
    %p132 = scmp.eq.s32.totalorder %s21, 1
    %p133 = por %p131, %p132
    %p135 = scmp.ne.s32.totalorder %s120, %s134
    %p136 = scmp.eq.s32.totalorder %s21, 0
    %p137 = por %p135, %p136
    %s139 = sadd.s32 %s138, 1
    %p142 = scmp.eq.s32.totalorder %s15, 1
    %p143 = scmp.ne.s32.totalorder %s138, %s140
    %p144 = scmp.eq.s32.totalorder %s15, 0
    %p145 = por %p143, %p144
    %p146 = scmp.ne.s32.totalorder %s138, %s140
    %p147 = scmp.eq.s32.totalorder %s20, 1
    %p148 = por %p146, %p147
    %p149 = scmp.ne.s32.totalorder %s140, %s141
    %p150 = scmp.eq.s32.totalorder %s20, 0
    %p151 = por %p149, %p150
    %p152 = scmp.ne.s32.totalorder %s140, %s141
    %p153 = scmp.eq.s32.totalorder %s21, 1
    %p154 = por %p152, %p153
    %p156 = scmp.ne.s32.totalorder %s141, %s155
    %p157 = scmp.eq.s32.totalorder %s21, 0
    %p158 = por %p156, %p157
    %s160 = sadd.s32 %s159, 1
    %p163 = scmp.eq.s32.totalorder %s15, 1
    %p164 = scmp.ne.s32.totalorder %s159, %s161
    %p165 = scmp.eq.s32.totalorder %s15, 0
    %p166 = por %p164, %p165
    %p167 = scmp.ne.s32.totalorder %s159, %s161
    %p168 = scmp.eq.s32.totalorder %s20, 1
    %p169 = por %p167, %p168
    %p170 = scmp.ne.s32.totalorder %s161, %s162
    %p171 = scmp.eq.s32.totalorder %s20, 0
    %p172 = por %p170, %p171
    %p173 = scmp.ne.s32.totalorder %s161, %s162
    %p174 = scmp.eq.s32.totalorder %s21, 1
    %p175 = por %p173, %p174
    %p177 = scmp.ne.s32.totalorder %s162, %s176
    %p178 = scmp.eq.s32.totalorder %s21, 0
    %p179 = por %p177, %p178
    %s181 = sadd.s32 %s180, 1
    %p184 = scmp.eq.s32.totalorder %s15, 1
    %p185 = scmp.ne.s32.totalorder %s180, %s182
    %p186 = scmp.eq.s32.totalorder %s15, 0
    %p187 = por %p185, %p186
    %p188 = scmp.ne.s32.totalorder %s180, %s182
    %p189 = scmp.eq.s32.totalorder %s20, 1
    %p190 = por %p188, %p189
    %p191 = scmp.ne.s32.totalorder %s182, %s183
    %p192 = scmp.eq.s32.totalorder %s20, 0
    %p193 = por %p191, %p192
    %p194 = scmp.ne.s32.totalorder %s182, %s183
    %p195 = scmp.eq.s32.totalorder %s21, 1
    %p196 = por %p194, %p195
    %p198 = scmp.ne.s32.totalorder %s183, %s197
    %p199 = scmp.eq.s32.totalorder %s21, 0
    %p200 = por %p198, %p199
    %s202 = sadd.s32 %s201, 1
    %p205 = scmp.eq.s32.totalorder %s15, 1
    %p206 = scmp.ne.s32.totalorder %s201, %s203
    %p207 = scmp.eq.s32.totalorder %s15, 0
    %p208 = por %p206, %p207
    %p209 = scmp.ne.s32.totalorder %s201, %s203
    %p210 = scmp.eq.s32.totalorder %s20, 1
    %p211 = por %p209, %p210
    %p212 = scmp.ne.s32.totalorder %s203, %s204
    %p213 = scmp.eq.s32.totalorder %s20, 0
    %p214 = por %p212, %p213
    %p215 = scmp.ne.s32.totalorder %s203, %s204
    %p216 = scmp.eq.s32.totalorder %s21, 1
    %p217 = por %p215, %p216
    %p219 = scmp.ne.s32.totalorder %s204, %s218
    %p220 = scmp.eq.s32.totalorder %s21, 0
    %p221 = por %p219, %p220
    %s222 = ssub.s32 %s15, %s22
    %p223 = scmp.eq.s32.totalorder %s222, 0
    %s225 = sadd.s32 %s224, 1
    %s226 = scalar_select %p223, %s224, %s225
    %p229 = pneg %p223
    %p230 = scmp.eq.s32.totalorder %s15, 1
    %p231 = por %p229, %p230
    %p232 = scmp.ne.s32.totalorder %s224, %s227
    %p233 = scmp.eq.s32.totalorder %s15, 0
    %p234 = por %p232, %p233
    %p235 = scmp.ne.s32.totalorder %s224, %s227
    %p236 = scmp.eq.s32.totalorder %s20, 1
    %p237 = por %p235, %p236
    %p238 = scmp.ne.s32.totalorder %s227, %s228
    %p239 = scmp.eq.s32.totalorder %s20, 0
    %p240 = por %p238, %p239
    %p241 = scmp.ne.s32.totalorder %s227, %s228
    %p242 = scmp.eq.s32.totalorder %s21, 1
    %p243 = por %p241, %p242
    %p245 = scmp.ne.s32.totalorder %s228, %s244
    %p246 = scmp.eq.s32.totalorder %s21, 0
    %p247 = por %p245, %p246
    %p248 = scmp.le.s32.totalorder 1, %s15
    %p249 = scmp.lt.s32.totalorder %s15, 3
    %p250 = pnand %p248, %p249
    %p251 = pneg %p250
    // Predicated region
    $region9: #{up_forward.1} parent=5 // pred_check
      _
    $region10: #{up_forward.1} parent=5 // pred_check_branch
      %253 = sbr.rel (%p250) target = $region12
    $region11: #{up_forward.1} parent=5 // pred_region
      %s254 = ssub.s32 %s15, 1
      // Predicated region
      $region13: #{up_forward.1} parent=11 // pred_check
        %p255 = pneg %p88
      $region14: #{up_forward.1} parent=11 // pred_check_branch
        %257 = sbr.rel (%p255) target = $region16
      $region15: #{up_forward.1} parent=11 // pred_region
        _
      $region16: #{up_forward.1} parent=11 // pred_fallthru
        _
      // Predicated region
      $region17: #{up_forward.1} parent=11 // pred_check
        %p258 = pneg %p109
      $region18: #{up_forward.1} parent=11 // pred_check_branch
        %260 = sbr.rel (%p258) target = $region20
      $region19: #{up_forward.1} parent=11 // pred_region
        _
      $region20: #{up_forward.1} parent=11 // pred_fallthru
        _
      // Predicated region
      $region21: #{up_forward.1} parent=11 // pred_check
        %p261 = pneg %p130
      $region22: #{up_forward.1} parent=11 // pred_check_branch
        %263 = sbr.rel (%p261) target = $region24
      $region23: #{up_forward.1} parent=11 // pred_region
        _
      $region24: #{up_forward.1} parent=11 // pred_fallthru
        _
      // Predicated region
      $region25: #{up_forward.1} parent=11 // pred_check
        %p264 = pneg %p151
      $region26: #{up_forward.1} parent=11 // pred_check_branch
        %266 = sbr.rel (%p264) target = $region28
      $region27: #{up_forward.1} parent=11 // pred_region
        _
      $region28: #{up_forward.1} parent=11 // pred_fallthru
        _
      // Predicated region
      $region29: #{up_forward.1} parent=11 // pred_check
        %p267 = pneg %p172
      $region30: #{up_forward.1} parent=11 // pred_check_branch
        %269 = sbr.rel (%p267) target = $region32
      $region31: #{up_forward.1} parent=11 // pred_region
        _
      $region32: #{up_forward.1} parent=11 // pred_fallthru
        _
      // Predicated region
      $region33: #{up_forward.1} parent=11 // pred_check
        %p270 = pneg %p193
      $region34: #{up_forward.1} parent=11 // pred_check_branch
        %272 = sbr.rel (%p270) target = $region36
      $region35: #{up_forward.1} parent=11 // pred_region
        _
      $region36: #{up_forward.1} parent=11 // pred_fallthru
        _
      // Predicated region
      $region37: #{up_forward.1} parent=11 // pred_check
        %p273 = pneg %p214
      $region38: #{up_forward.1} parent=11 // pred_check_branch
        %275 = sbr.rel (%p273) target = $region40
      $region39: #{up_forward.1} parent=11 // pred_region
        _
      $region40: #{up_forward.1} parent=11 // pred_fallthru
        _
    $region12: #{up_forward.1} parent=5 // pred_fallthru
      _
    %p276 = scmp.lt.s32.totalorder %s15, 2
    // Predicated region
    $region41: #{up_forward.1} parent=5 // pred_check
      %p277 = pneg %p276
    $region42: #{up_forward.1} parent=5 // pred_check_branch
      %279 = sbr.rel (%p277) target = $region44
    $region43: #{up_forward.1} parent=5 // pred_region
      // Predicated region
      $region45: #{up_forward.1} parent=43 // pred_check
        %p280 = pneg %p35
      $region46: #{up_forward.1} parent=43 // pred_check_branch
        %282 = sbr.rel (%p280) target = $region48
      $region47: #{up_forward.1} parent=43 // pred_region
        %p283 = scmp.lt.s32.totalorder %s15, 1
        %s284 = scalar_select %p283, %s15, 1
        %s285 = smul.addr %s284, 3
        %s286 = smul.addr %s285, 4
        %s287 = scalar_lea.vmem %s0, %s286
      $region48: #{up_forward.1} parent=43 // pred_fallthru
        _
      // Predicated region
      $region49: #{up_forward.1} parent=43 // pred_check
        %p288 = pneg %p61
      $region50: #{up_forward.1} parent=43 // pred_check_branch
        %290 = sbr.rel (%p288) target = $region52
      $region51: #{up_forward.1} parent=43 // pred_region
        %p291 = scmp.lt.s32.totalorder %s15, 1
        %s292 = scalar_select %p291, %s15, 1
        %s293 = smul.addr %s292, 3
        %s294 = smul.addr %s293, 4
        %s295 = scalar_lea.vmem %s1, %s294
      $region52: #{up_forward.1} parent=43 // pred_fallthru
        _
    $region44: #{up_forward.1} parent=5 // pred_fallthru
      _
    %p296 = scmp.le.s32.totalorder 1, %s15
    %p297 = scmp.lt.s32.totalorder %s15, 3
    %p298 = pnand %p296, %p297
    %p299 = pneg %p298
    // Predicated region
    $region53: #{up_forward.1} parent=5 // pred_check
      _
    $region54: #{up_forward.1} parent=5 // pred_check_branch
      %301 = sbr.rel (%p298) target = $region56
    $region55: #{up_forward.1} parent=5 // pred_region
      %s302 = ssub.s32 %s15, 1
      %p303 = scmp.lt.s32.totalorder %s20, 1
      %s304 = scalar_select %p303, %s20, 1
      %s305 = smul.addr %s304, 3
      %s306 = smul.addr %s305, 4
      %s307 = scalar_lea.vmem %s0, %s306
      %p308 = pneg %p41
      %p309 = pneg %p38
      %p310 = scmp.lt.s32.totalorder %s20, 1
      %s311 = scalar_select %p310, %s20, 1
      %s312 = smul.addr %s311, 3
      %s313 = smul.addr %s312, 4
      %s314 = scalar_lea.vmem %s1, %s313
      %p315 = pneg %p67
      %p316 = pneg %p64
      %p317 = pneg %p88
      %p318 = pneg %p85
      %p319 = pneg %p109
      %p320 = pneg %p106
      %p321 = pneg %p130
      %p322 = pneg %p127
      %p323 = pneg %p151
      %p324 = pneg %p148
      %p325 = pneg %p172
      %p326 = pneg %p169
      %p327 = pneg %p193
      %p328 = pneg %p190
      %p329 = pneg %p214
      %p330 = pneg %p211
      %p331 = pneg %p240
      %p332 = pneg %p237
      %p333 = scmp.lt.s32.totalorder %s20, 1
      %s334 = scalar_select %p333, %s20, 1
      %s335 = smul.addr %s334, 3
      %s336 = smul.addr %s335, 8
      %s337 = scalar_lea.vmem %s9, %s336
      %p338 = scmp.lt.s32.totalorder %s20, 1
      %s339 = scalar_select %p338, %s20, 1
      %s340 = smul.addr %s339, 3
      %s341 = smul.addr %s340, 4
      %s342 = scalar_lea.vmem %s0, %s341
      %p343 = scmp.lt.s32.totalorder %s20, 1
      %s344 = scalar_select %p343, %s20, 1
      %s345 = smul.addr %s344, 3
      %s346 = smul.addr %s345, 4
      %s347 = scalar_lea.vmem %s1, %s346
      %p348 = scmp.lt.s32.totalorder %s20, 1
      %s349 = scalar_select %p348, %s20, 1
      %s350 = smul.addr %s349, 3
      %s351 = smul.addr %s350, 8
      %s352 = scalar_lea.vmem %s9, %s351
      %v354 = vld [vmem:[%s342] sm:$0xff]
      %v355 = vld [vmem:[%s342 + $0x8] sm:$0xf]
      %358 = vrot.lane.b32.xlu0 %v354, 111
      %v359 = vpop.permute.xlu0 %358
      %360 = vrot.lane.b32.xlu0 %v355, 111
      %v361 = vpop.permute.xlu0 %360
      %v362 = vrot.slane %v359, 4
      %v363 = vrot.slane %v361, 4
      %vm364 = vcmask 1043456
      %v365 = vsel %vm364, %v362, %v363
      %vm366 = vcmask 908288
      %v367 = vsel %vm366, %v359, %v365
      %370 = vst [vmem:[#allocation3] sm:$0xff] %v367
      %vm371 = vcmask 257024
      %372 = vst.msk [vmem:[#allocation3 + $0x8] sm:$0xf] %vm371, %v361
      %v373 = vld [vmem:[%s347] sm:$0xff]
      %v374 = vld [vmem:[%s347 + $0x8] sm:$0xf]
      %377 = vrot.lane.b32.xlu0 %v373, 111
      %v378 = vpop.permute.xlu0 %377
      %379 = vrot.lane.b32.xlu0 %v374, 111
      %v380 = vpop.permute.xlu0 %379
      %v381 = vrot.slane %v378, 4
      %v382 = vrot.slane %v380, 4
      %v383 = vsel %vm364, %v381, %v382
      %v384 = vsel %vm366, %v378, %v383
      %387 = vst [vmem:[#allocation3 + $0xc] sm:$0xff] %v384
      %388 = vst.msk [vmem:[#allocation3 + $0x14] sm:$0xf] %vm371, %v380
      %v389 = vld [vmem:[%s342] sm:$0xff]
      %v390 = vld [vmem:[%s342 + $0x8] sm:$0xf]
      %393 = vrot.lane.b32.xlu0 %v389, 110
      %v394 = vpop.permute.xlu0 %393
      %395 = vrot.lane.b32.xlu0 %v390, 110
      %v396 = vpop.permute.xlu0 %395
      %v397 = vrot.slane %v394, 4
      %v398 = vrot.slane %v396, 4
      %v399 = vsel %vm364, %v397, %v398
      %vm400 = vcmask 900096
      %v401 = vsel %vm400, %v394, %v399
      %404 = vst [vmem:[#allocation3 + $0x18] sm:$0xff] %v401
      %405 = vst.msk [vmem:[#allocation3 + $0x20] sm:$0xf] %vm371, %v396
      %v406 = vld [vmem:[%s347] sm:$0xff]
      %v407 = vld [vmem:[%s347 + $0x8] sm:$0xf]
      %410 = vrot.lane.b32.xlu0 %v406, 110
      %v411 = vpop.permute.xlu0 %410
      %412 = vrot.lane.b32.xlu0 %v407, 110
      %v413 = vpop.permute.xlu0 %412
      %v414 = vrot.slane %v411, 4
      %v415 = vrot.slane %v413, 4
      %v416 = vsel %vm364, %v414, %v415
      %v417 = vsel %vm400, %v411, %v416
      %420 = vst [vmem:[#allocation3 + $0x24] sm:$0xff] %v417
      %421 = vst.msk [vmem:[#allocation3 + $0x2c] sm:$0xf] %vm371, %v413
      %v422 = vld [vmem:[%s342] sm:$0xff]
      %v423 = vld [vmem:[%s342 + $0x8] sm:$0xf]
      %426 = vrot.lane.b32.xlu0 %v422, 109
      %v427 = vpop.permute.xlu0 %426
      %428 = vrot.lane.b32.xlu0 %v423, 109
      %v429 = vpop.permute.xlu0 %428
      %v430 = vrot.slane %v427, 4
      %v431 = vrot.slane %v429, 4
      %v432 = vsel %vm364, %v430, %v431
      %vm433 = vcmask 891904
      %v434 = vsel %vm433, %v427, %v432
      %437 = vst [vmem:[#allocation3 + $0x30] sm:$0xff] %v434
      %438 = vst.msk [vmem:[#allocation3 + $0x38] sm:$0xf] %vm371, %v429
      %v439 = vld [vmem:[%s347] sm:$0xff]
      %v440 = vld [vmem:[%s347 + $0x8] sm:$0xf]
      %443 = vrot.lane.b32.xlu0 %v439, 109
      %v444 = vpop.permute.xlu0 %443
      %445 = vrot.lane.b32.xlu0 %v440, 109
      %v446 = vpop.permute.xlu0 %445
      %v447 = vrot.slane %v444, 4
      %v448 = vrot.slane %v446, 4
      %v449 = vsel %vm364, %v447, %v448
      %v450 = vsel %vm433, %v444, %v449
      %453 = vst [vmem:[#allocation3 + $0x3c] sm:$0xff] %v450
      %454 = vst.msk [vmem:[#allocation3 + $0x44] sm:$0xf] %vm371, %v446
      %v455 = vld [vmem:[%s342] sm:$0xff]
      %v456 = vld [vmem:[%s342 + $0x8] sm:$0xf]
      %459 = vrot.lane.b32.xlu0 %v455, 93
      %v460 = vpop.permute.xlu0 %459
      %461 = vrot.lane.b32.xlu0 %v456, 93
      %v462 = vpop.permute.xlu0 %461
      %v463 = vrot.slane %v460, 4
      %v464 = vrot.slane %v462, 4
      %v465 = vsel %vm364, %v463, %v464
      %vm466 = vcmask 760832
      %v467 = vsel %vm466, %v460, %v465
      %470 = vst [vmem:[#allocation3 + $0x48] sm:$0xff] %v467
      %471 = vst.msk [vmem:[#allocation3 + $0x50] sm:$0xf] %vm371, %v462
      %v472 = vld [vmem:[%s347] sm:$0xff]
      %v473 = vld [vmem:[%s347 + $0x8] sm:$0xf]
      %476 = vrot.lane.b32.xlu0 %v472, 93
      %v477 = vpop.permute.xlu0 %476
      %478 = vrot.lane.b32.xlu0 %v473, 93
      %v479 = vpop.permute.xlu0 %478
      %v480 = vrot.slane %v477, 4
      %v481 = vrot.slane %v479, 4
      %v482 = vsel %vm364, %v480, %v481
      %v483 = vsel %vm466, %v477, %v482
      %486 = vst [vmem:[#allocation3 + $0x54] sm:$0xff] %v483
      %487 = vst.msk [vmem:[#allocation3 + $0x5c] sm:$0xf] %vm371, %v479
      %v488 = vld [vmem:[%s342] sm:$0xff]
      %v489 = vld [vmem:[%s342 + $0x8] sm:$0xf]
      %492 = vrot.lane.b32.xlu0 %v488, 92
      %v493 = vpop.permute.xlu0 %492
      %494 = vrot.lane.b32.xlu0 %v489, 92
      %v495 = vpop.permute.xlu0 %494
      %v496 = vrot.slane %v493, 4
      %v497 = vrot.slane %v495, 4
      %v498 = vsel %vm364, %v496, %v497
      %vm499 = vcmask 752640
      %v500 = vsel %vm499, %v493, %v498
      %503 = vst [vmem:[#allocation3 + $0x60] sm:$0xff] %v500
      %504 = vst.msk [vmem:[#allocation3 + $0x68] sm:$0xf] %vm371, %v495
      %v505 = vld [vmem:[%s347] sm:$0xff]
      %v506 = vld [vmem:[%s347 + $0x8] sm:$0xf]
      %509 = vrot.lane.b32.xlu0 %v505, 92
      %v510 = vpop.permute.xlu0 %509
      %511 = vrot.lane.b32.xlu0 %v506, 92
      %v512 = vpop.permute.xlu0 %511
      %v513 = vrot.slane %v510, 4
      %v514 = vrot.slane %v512, 4
      %v515 = vsel %vm364, %v513, %v514
      %v516 = vsel %vm499, %v510, %v515
      %519 = vst [vmem:[#allocation3 + $0x6c] sm:$0xff] %v516
      %520 = vst.msk [vmem:[#allocation3 + $0x74] sm:$0xf] %vm371, %v512
      %v521 = vld [vmem:[%s342] sm:$0xff]
      %v522 = vld [vmem:[%s342 + $0x8] sm:$0xf]
      %525 = vrot.lane.b32.xlu0 %v521, 91
      %v526 = vpop.permute.xlu0 %525
      %527 = vrot.lane.b32.xlu0 %v522, 91
      %v528 = vpop.permute.xlu0 %527
      %v529 = vrot.slane %v526, 4
      %v530 = vrot.slane %v528, 4
      %v531 = vsel %vm364, %v529, %v530
      %vm532 = vcmask 744448
      %v533 = vsel %vm532, %v526, %v531
      %536 = vst [vmem:[#allocation3 + $0x78] sm:$0xff] %v533
      %537 = vst.msk [vmem:[#allocation3 + $0x80] sm:$0xf] %vm371, %v528
      %v538 = vld [vmem:[%s347] sm:$0xff]
      %v539 = vld [vmem:[%s347 + $0x8] sm:$0xf]
      %542 = vrot.lane.b32.xlu0 %v538, 91
      %v543 = vpop.permute.xlu0 %542
      %544 = vrot.lane.b32.xlu0 %v539, 91
      %v545 = vpop.permute.xlu0 %544
      %v546 = vrot.slane %v543, 4
      %v547 = vrot.slane %v545, 4
      %v548 = vsel %vm364, %v546, %v547
      %v549 = vsel %vm532, %v543, %v548
      %552 = vst [vmem:[#allocation3 + $0x84] sm:$0xff] %v549
      %553 = vst.msk [vmem:[#allocation3 + $0x8c] sm:$0xf] %vm371, %v545
      %v554 = vld [vmem:[%s342] sm:$0xff]
      %v555 = vld [vmem:[%s342 + $0x8] sm:$0xf]
      %558 = vrot.lane.b32.xlu0 %v554, 75
      %v559 = vpop.permute.xlu0 %558
      %560 = vrot.lane.b32.xlu0 %v555, 75
      %v561 = vpop.permute.xlu0 %560
      %v562 = vrot.slane %v559, 4
      %v563 = vrot.slane %v561, 4
      %v564 = vsel %vm364, %v562, %v563
      %vm565 = vcmask 613376
      %v566 = vsel %vm565, %v559, %v564
      %569 = vst [vmem:[#allocation3 + $0x90] sm:$0xff] %v566
      %570 = vst.msk [vmem:[#allocation3 + $0x98] sm:$0xf] %vm371, %v561
      %v571 = vld [vmem:[%s347] sm:$0xff]
      %v572 = vld [vmem:[%s347 + $0x8] sm:$0xf]
      %575 = vrot.lane.b32.xlu0 %v571, 75
      %v576 = vpop.permute.xlu0 %575
      %577 = vrot.lane.b32.xlu0 %v572, 75
      %v578 = vpop.permute.xlu0 %577
      %v579 = vrot.slane %v576, 4
      %v580 = vrot.slane %v578, 4
      %v581 = vsel %vm364, %v579, %v580
      %v582 = vsel %vm565, %v576, %v581
      %585 = vst [vmem:[#allocation3 + $0x9c] sm:$0xff] %v582
      %586 = vst.msk [vmem:[#allocation3 + $0xa4] sm:$0xf] %vm371, %v578
      %v587 = vld [vmem:[%s342] sm:$0xff]
      %v588 = vld [vmem:[%s342 + $0x8] sm:$0xf]
      %591 = vrot.lane.b32.xlu0 %v587, 74
      %v592 = vpop.permute.xlu0 %591
      %593 = vrot.lane.b32.xlu0 %v588, 74
      %v594 = vpop.permute.xlu0 %593
      %v595 = vrot.slane %v592, 4
      %v596 = vrot.slane %v594, 4
      %v597 = vsel %vm364, %v595, %v596
      %vm598 = vcmask 605184
      %v599 = vsel %vm598, %v592, %v597
      %602 = vst [vmem:[#allocation3 + $0xa8] sm:$0xff] %v599
      %603 = vst.msk [vmem:[#allocation3 + $0xb0] sm:$0xf] %vm371, %v594
      %v604 = vld [vmem:[%s347] sm:$0xff]
      %v605 = vld [vmem:[%s347 + $0x8] sm:$0xf]
      %608 = vrot.lane.b32.xlu0 %v604, 74
      %v609 = vpop.permute.xlu0 %608
      %610 = vrot.lane.b32.xlu0 %v605, 74
      %v611 = vpop.permute.xlu0 %610
      %v612 = vrot.slane %v609, 4
      %v613 = vrot.slane %v611, 4
      %v614 = vsel %vm364, %v612, %v613
      %v615 = vsel %vm598, %v609, %v614
      %618 = vst [vmem:[#allocation3 + $0xb4] sm:$0xff] %v615
      %619 = vst.msk [vmem:[#allocation3 + $0xbc] sm:$0xf] %vm371, %v611
      %v620 = vld [vmem:[%s342] sm:$0xff]
      %v621 = vld [vmem:[%s342 + $0x8] sm:$0xf]
      %624 = vrot.lane.b32.xlu0 %v620, 73
      %v625 = vpop.permute.xlu0 %624
      %626 = vrot.lane.b32.xlu0 %v621, 73
      %v627 = vpop.permute.xlu0 %626
      %v628 = vrot.slane %v625, 4
      %v629 = vrot.slane %v627, 4
      %v630 = vsel %vm364, %v628, %v629
      %vm631 = vcmask 596992
      %v632 = vsel %vm631, %v625, %v630
      %635 = vst [vmem:[#allocation3 + $0xc0] sm:$0xff] %v632
      %636 = vst.msk [vmem:[#allocation3 + $0xc8] sm:$0xf] %vm371, %v627
      %v637 = vld [vmem:[%s347] sm:$0xff]
      %v638 = vld [vmem:[%s347 + $0x8] sm:$0xf]
      %641 = vrot.lane.b32.xlu0 %v637, 73
      %v642 = vpop.permute.xlu0 %641
      %643 = vrot.lane.b32.xlu0 %v638, 73
      %v644 = vpop.permute.xlu0 %643
      %v645 = vrot.slane %v642, 4
      %v646 = vrot.slane %v644, 4
      %v647 = vsel %vm364, %v645, %v646
      %v648 = vsel %vm631, %v642, %v647
      %651 = vst [vmem:[#allocation3 + $0xcc] sm:$0xff] %v648
      %652 = vst.msk [vmem:[#allocation3 + $0xd4] sm:$0xf] %vm371, %v644
      %v653 = vld [vmem:[%s3] sm:$0xff]
      %v654 = vld [vmem:[#allocation3] sm:$0xff]
      %v655 = vld [vmem:[#allocation3 + $0x8] sm:$0xf]
      %v656 = vld [vmem:[#allocation3 + $0xc] sm:$0xff]
      %v657 = vld [vmem:[#allocation3 + $0x14] sm:$0xf]
      %v658 = vld [vmem:[#allocation3 + $0x18] sm:$0xff]
      %v659 = vld [vmem:[#allocation3 + $0x20] sm:$0xf]
      %v660 = vld [vmem:[#allocation3 + $0x24] sm:$0xff]
      %v661 = vld [vmem:[#allocation3 + $0x2c] sm:$0xf]
      %v662 = vld [vmem:[#allocation3 + $0x30] sm:$0xff]
      %v663 = vld [vmem:[#allocation3 + $0x38] sm:$0xf]
      %v664 = vld [vmem:[#allocation3 + $0x3c] sm:$0xff]
      %v665 = vld [vmem:[#allocation3 + $0x44] sm:$0xf]
      %v666 = vld [vmem:[#allocation3 + $0x48] sm:$0xff]
      %v667 = vld [vmem:[#allocation3 + $0x50] sm:$0xf]
      %v668 = vld [vmem:[#allocation3 + $0x54] sm:$0xff]
      %v669 = vld [vmem:[#allocation3 + $0x5c] sm:$0xf]
      %v670 = vld [vmem:[#allocation3 + $0x60] sm:$0xff]
      %v671 = vld [vmem:[#allocation3 + $0x68] sm:$0xf]
      %v672 = vld [vmem:[#allocation3 + $0x6c] sm:$0xff]
      %v673 = vld [vmem:[#allocation3 + $0x74] sm:$0xf]
      %v674 = vld [vmem:[#allocation3 + $0x78] sm:$0xff]
      %v675 = vld [vmem:[#allocation3 + $0x80] sm:$0xf]
      %v676 = vld [vmem:[#allocation3 + $0x84] sm:$0xff]
      %v677 = vld [vmem:[#allocation3 + $0x8c] sm:$0xf]
      %v678 = vld [vmem:[#allocation3 + $0x90] sm:$0xff]
      %v679 = vld [vmem:[#allocation3 + $0x98] sm:$0xf]
      %v680 = vld [vmem:[#allocation3 + $0x9c] sm:$0xff]
      %v681 = vld [vmem:[#allocation3 + $0xa4] sm:$0xf]
      %v682 = vld [vmem:[#allocation3 + $0xa8] sm:$0xff]
      %v683 = vld [vmem:[#allocation3 + $0xb0] sm:$0xf]
      %v684 = vld [vmem:[#allocation3 + $0xb4] sm:$0xff]
      %v685 = vld [vmem:[#allocation3 + $0xbc] sm:$0xf]
      %v686 = vld [vmem:[#allocation3 + $0xc0] sm:$0xff]
      %v687 = vld [vmem:[#allocation3 + $0xc8] sm:$0xf]
      %v688 = vld [vmem:[#allocation3 + $0xcc] sm:$0xff]
      %v689 = vld [vmem:[#allocation3 + $0xd4] sm:$0xf]
      %v691 = vunpack.c.l.b16 %v653
      %v692 = vunpack.c.h.b16 %v653
      %v693 = vpack.c.b16 %v691, %v691
      %v694 = vpack.c.b16 %v692, %v692
      %v732 = vunpack.c.l.b16 %v654
      %v733 = vunpack.c.h.b16 %v654
      %v734 = vunpack.c.l.b16 %v655
      %v735 = vunpack.c.l.b16 %v656
      %v736 = vunpack.c.h.b16 %v656
      %v737 = vunpack.c.l.b16 %v657
      %v738 = vunpack.c.l.b16 %v658
      %v739 = vunpack.c.h.b16 %v658
      %v740 = vunpack.c.l.b16 %v659
      %v741 = vunpack.c.l.b16 %v660
      %v742 = vunpack.c.h.b16 %v660
      %v743 = vunpack.c.l.b16 %v661
      %v744 = vunpack.c.l.b16 %v662
      %v745 = vunpack.c.h.b16 %v662
      %v746 = vunpack.c.l.b16 %v663
      %v747 = vunpack.c.l.b16 %v664
      %v748 = vunpack.c.h.b16 %v664
      %v749 = vunpack.c.l.b16 %v665
      %v750 = vunpack.c.l.b16 %v666
      %v751 = vunpack.c.h.b16 %v666
      %v752 = vunpack.c.l.b16 %v667
      %v753 = vunpack.c.l.b16 %v668
      %v754 = vunpack.c.h.b16 %v668
      %v755 = vunpack.c.l.b16 %v669
      %v756 = vunpack.c.l.b16 %v670
      %v757 = vunpack.c.h.b16 %v670
      %v758 = vunpack.c.l.b16 %v671
      %v759 = vunpack.c.l.b16 %v672
      %v760 = vunpack.c.h.b16 %v672
      %v761 = vunpack.c.l.b16 %v673
      %v762 = vunpack.c.l.b16 %v674
      %v763 = vunpack.c.h.b16 %v674
      %v764 = vunpack.c.l.b16 %v675
      %v765 = vunpack.c.l.b16 %v676
      %v766 = vunpack.c.h.b16 %v676
      %v767 = vunpack.c.l.b16 %v677
      %v768 = vunpack.c.l.b16 %v678
      %v769 = vunpack.c.h.b16 %v678
      %v770 = vunpack.c.l.b16 %v679
      %v771 = vunpack.c.l.b16 %v680
      %v772 = vunpack.c.h.b16 %v680
      %v773 = vunpack.c.l.b16 %v681
      %v774 = vunpack.c.l.b16 %v682
      %v775 = vunpack.c.h.b16 %v682
      %v776 = vunpack.c.l.b16 %v683
      %v777 = vunpack.c.l.b16 %v684
      %v778 = vunpack.c.h.b16 %v684
      %v779 = vunpack.c.l.b16 %v685
      %v780 = vunpack.c.l.b16 %v686
      %v781 = vunpack.c.h.b16 %v686
      %v782 = vunpack.c.l.b16 %v687
      %v783 = vunpack.c.l.b16 %v688
      %v784 = vunpack.c.h.b16 %v688
      %v785 = vunpack.c.l.b16 %v689
      %v786 = vpack.c.b16 %v735, %v732
      %v787 = vpack.c.b16 %v736, %v733
      %v788 = vpack.c.b16 %v737, %v734
      %v789 = vpack.c.b16 %v741, %v738
      %v790 = vpack.c.b16 %v742, %v739
      %v791 = vpack.c.b16 %v743, %v740
      %v792 = vpack.c.b16 %v747, %v744
      %v793 = vpack.c.b16 %v748, %v745
      %v794 = vpack.c.b16 %v749, %v746
      %v795 = vpack.c.b16 %v753, %v750
      %v796 = vpack.c.b16 %v754, %v751
      %v797 = vpack.c.b16 %v755, %v752
      %v798 = vpack.c.b16 %v759, %v756
      %v799 = vpack.c.b16 %v760, %v757
      %v800 = vpack.c.b16 %v761, %v758
      %v801 = vpack.c.b16 %v765, %v762
      %v802 = vpack.c.b16 %v766, %v763
      %v803 = vpack.c.b16 %v767, %v764
      %v804 = vpack.c.b16 %v771, %v768
      %v805 = vpack.c.b16 %v772, %v769
      %v806 = vpack.c.b16 %v773, %v770
      %v807 = vpack.c.b16 %v777, %v774
      %v808 = vpack.c.b16 %v778, %v775
      %v809 = vpack.c.b16 %v779, %v776
      %v810 = vpack.c.b16 %v783, %v780
      %v811 = vpack.c.b16 %v784, %v781
      %v812 = vpack.c.b16 %v785, %v782
      %vm840 = vcmask 130048
      %v842 = vsel %vm840, %v694, 0
      %844 = vmatprep.subr.bf16.mxu0 %v808
      %845 = vmatpush1.bf16.msra.mxu0 %v807
      %846 = vmatprep.subr.bf16.mxu0 %v805
      %847 = vmatpush1.bf16.msra.mxu0 %v804
      %848 = vmatprep.subr.bf16.mxu0 %v802
      %849 = vmatpush1.bf16.msra.mxu0 %v801
      %850 = vmatprep.subr.bf16.mxu0 %v799
      %851 = vmatpush1.bf16.msra.mxu0 %v798
      %852 = vmatprep.subr.bf16.mxu0 %v796
      %853 = vmatpush1.bf16.msra.mxu0 %v795
      %854 = vmatprep.subr.bf16.mxu0 %v793
      %855 = vmatpush1.bf16.msra.mxu0 %v792
      %856 = vmatprep.subr.bf16.mxu0 %v790
      %857 = vmatpush1.bf16.msra.mxu0 %v789
      %858 = vmatprep.subr.bf16.mxu0 %v787
      %859 = vmatpush1.bf16.msra.mxu0 %v786
      %860 = vmatprep.subr.bf16.mxu0 0
      %861 = vmatpush2.bf16.msra.mxu0 0
      %862 = vmatprep.subr.bf16.mxu0 0
      %863 = vmatpush2.bf16.msra.mxu0 0
      %864 = vmatprep.subr.bf16.mxu0 0
      %865 = vmatpush2.bf16.msra.mxu0 0
      %866 = vmatprep.subr.bf16.mxu0 0
      %867 = vmatpush2.bf16.msra.mxu0 0
      %868 = vmatprep.subr.bf16.mxu0 0
      %869 = vmatpush2.bf16.msra.mxu0 0
      %870 = vmatprep.subr.bf16.mxu0 0
      %871 = vmatpush2.bf16.msra.mxu0 0
      %872 = vmatprep.subr.bf16.mxu0 0
      %873 = vmatpush2.bf16.msra.mxu0 0
      %874 = vmatprep.subr.bf16.mxu0 %v811
      %875 = vmatpush2.bf16.msra.mxu0 %v810
      %876 = vmatprep.mubr.bf16.mxu0 %v842
      %877 = vmatmul.mubr.bf16.gmra.mxu0 %v693
      %v878 = vpop.f32.mrf.mxu0
      %v879 = vadd.f32 0.0, %v878
      %v880 = vpop.f32.mrf.mxu0
      %v881 = vadd.f32 0.0, %v880
      %v882 = vpop.f32.mrf.mxu0
      %v883 = vpop.f32.mrf.mxu0
      %884 = vdwg.mxu0
      %885 = vmatprep.subr.bf16.mxu0 0
      %886 = vmatpush1.bf16.msra.mxu0 %v809
      %887 = vmatprep.subr.bf16.mxu0 0
      %888 = vmatpush1.bf16.msra.mxu0 %v806
      %889 = vmatprep.subr.bf16.mxu0 0
      %890 = vmatpush1.bf16.msra.mxu0 %v803
      %891 = vmatprep.subr.bf16.mxu0 0
      %892 = vmatpush1.bf16.msra.mxu0 %v800
      %893 = vmatprep.subr.bf16.mxu0 0
      %894 = vmatpush1.bf16.msra.mxu0 %v797
      %895 = vmatprep.subr.bf16.mxu0 0
      %896 = vmatpush1.bf16.msra.mxu0 %v794
      %897 = vmatprep.subr.bf16.mxu0 0
      %898 = vmatpush1.bf16.msra.mxu0 %v791
      %899 = vmatprep.subr.bf16.mxu0 0
      %900 = vmatpush1.bf16.msra.mxu0 %v788
      %901 = vmatprep.subr.bf16.mxu0 0
      %902 = vmatpush2.bf16.msra.mxu0 0
      %903 = vmatprep.subr.bf16.mxu0 0
      %904 = vmatpush2.bf16.msra.mxu0 0
      %905 = vmatprep.subr.bf16.mxu0 0
      %906 = vmatpush2.bf16.msra.mxu0 0
      %907 = vmatprep.subr.bf16.mxu0 0
      %908 = vmatpush2.bf16.msra.mxu0 0
      %909 = vmatprep.subr.bf16.mxu0 0
      %910 = vmatpush2.bf16.msra.mxu0 0
      %911 = vmatprep.subr.bf16.mxu0 0
      %912 = vmatpush2.bf16.msra.mxu0 0
      %913 = vmatprep.subr.bf16.mxu0 0
      %914 = vmatpush2.bf16.msra.mxu0 0
      %915 = vmatprep.subr.bf16.mxu0 0
      %916 = vmatpush2.bf16.msra.mxu0 %v812
      %917 = vmatprep.mubr.bf16.mxu0 %v842
      %918 = vmatmul.mubr.bf16.gmra.mxu0 %v693
      %v919 = vpop.f32.mrf.mxu0
      %v920 = vadd.f32 0.0, %v919
      %v921 = vpop.f32.mrf.mxu0
      %v922 = vpop.f32.mrf.mxu0
      %v923 = vpop.f32.mrf.mxu0
      %924 = vdwg.mxu0
      %v925 = vld [vmem:[%s4] sm:$0xff]
      %927 = vset.pattern.permute.xlu0 0
      %928 = vperm.xlu0 %927, %v925
      %v929 = vpop.permute.xlu0 %928
      %v931 = vmul.f32 %v879, %v929
      %v932 = vmul.f32 %v881, %v929
      %v933 = vmul.f32 %v920, %v929
      %v934 = vld [vmem:[%s5] sm:$0xff]
      %936 = vset.pattern.permute.xlu0 0
      %937 = vperm.xlu0 %936, %v934
      %v938 = vpop.permute.xlu0 %937
      %v940 = vadd.f32 %v931, %v938
      %v941 = vadd.f32 %v932, %v938
      %v942 = vadd.f32 %v933, %v938
      %v943 = vmax.f32 %v940, 0.0
      %v944 = vmax.f32 %v941, 0.0
      %v945 = vmax.f32 %v942, 0.0
      %v946 = vld [vmem:[%s2] sm:$0x7]
      %v948 = vlaneseq
      %v949 = vshrl.u32 %v948, 7
      %v950 = vsub.s32 0, %v949
      %v951 = vrot.slane %v946, %v950
      %v952 = vlaneseq
      %v953 = vshrl.u32 %v952, 7
      %v954 = vsub.s32 1, %v953
      %v955 = vrot.slane %v946, %v954
      %v956 = vlaneseq
      %v957 = vshrl.u32 %v956, 7
      %v958 = vsub.s32 2, %v957
      %v959 = vrot.slane %v946, %v958
      %v963 = vmul.f32 %v943, %v951
      %v964 = vmul.f32 %v944, %v955
      %v965 = vmul.f32 %v945, %v959
      %vm966 = vcmask 1044328
      %967 = vst.msk [vmem:[#allocation2] sm:$0xf] %vm966, 0
      %vm968 = vcmask 412928
      %969 = vst.msk [vmem:[#allocation2 + $0xc] sm:$0xf] %vm968, 0
      %v970 = vpack.c.bf16 %v963, %v963
      %v971 = vpack.c.bf16 %v964, %v964
      %v972 = vpack.c.bf16 %v965, %v965
      %v976 = vunpack.c.l.b16 %v970
      %v977 = vunpack.c.l.b16 %v971
      %v978 = vunpack.c.l.b16 %v972
      %v979 = vpack.c.b16 %v977, %v976
      %v980 = vpack.c.b16 %v978, %v978
      %983 = vst [vmem:[#allocation2 + $0x4] sm:$0xff] %v979
      %984 = vst.msk [vmem:[#allocation2 + $0xc] sm:$0xf] %vm371, %v980
      %v985 = vld [vmem:[#allocation2] sm:$0xff]
      %v986 = vld [vmem:[#allocation2 + $0x8] sm:$0xff]
      %989 = vrot.lane.b32.xlu0 %v985, 19
      %v990 = vpop.permute.xlu0 %989
      %991 = vrot.lane.b32.xlu0 %v986, 19
      %v992 = vpop.permute.xlu0 %991
      %v993 = vrot.slane %v990, 4
      %v994 = vrot.slane %v992, 4
      %v995 = vsel %vm364, %v993, %v994
      %vm996 = vcmask 154624
      %v997 = vsel %vm996, %v990, %v995
      %v998 = vsel %vm996, %v992, %v994
      %1001 = vst [vmem:[#allocation4] sm:$0xff] %v997
      %1002 = vst.msk [vmem:[#allocation4 + $0x8] sm:$0xf] %vm371, %v998
      %v1003 = vld [vmem:[#allocation2] sm:$0xff]
      %v1004 = vld [vmem:[#allocation2 + $0x8] sm:$0xff]
      %1007 = vrot.lane.b32.xlu0 %v1003, 18
      %v1008 = vpop.permute.xlu0 %1007
      %1009 = vrot.lane.b32.xlu0 %v1004, 18
      %v1010 = vpop.permute.xlu0 %1009
      %v1011 = vrot.slane %v1008, 4
      %v1012 = vrot.slane %v1010, 4
      %v1013 = vsel %vm364, %v1011, %v1012
      %vm1014 = vcmask 146432
      %v1015 = vsel %vm1014, %v1008, %v1013
      %v1016 = vsel %vm1014, %v1010, %v1012
      %1019 = vst [vmem:[#allocation4 + $0xc] sm:$0xff] %v1015
      %1020 = vst.msk [vmem:[#allocation4 + $0x14] sm:$0xf] %vm371, %v1016
      %v1021 = vld [vmem:[#allocation2] sm:$0xff]
      %v1022 = vld [vmem:[#allocation2 + $0x8] sm:$0xff]
      %1025 = vrot.lane.b32.xlu0 %v1021, 17
      %v1026 = vpop.permute.xlu0 %1025
      %1027 = vrot.lane.b32.xlu0 %v1022, 17
      %v1028 = vpop.permute.xlu0 %1027
      %v1029 = vrot.slane %v1026, 4
      %v1030 = vrot.slane %v1028, 4
      %v1031 = vsel %vm364, %v1029, %v1030
      %vm1032 = vcmask 138240
      %v1033 = vsel %vm1032, %v1026, %v1031
      %v1034 = vsel %vm1032, %v1028, %v1030
      %1037 = vst [vmem:[#allocation4 + $0x18] sm:$0xff] %v1033
      %1038 = vst.msk [vmem:[#allocation4 + $0x20] sm:$0xf] %vm371, %v1034
      %v1039 = vld [vmem:[#allocation2] sm:$0xff]
      %v1040 = vld [vmem:[#allocation2 + $0x8] sm:$0xff]
      %1043 = vrot.lane.b32.xlu0 %v1039, 1
      %v1044 = vpop.permute.xlu0 %1043
      %1045 = vrot.lane.b32.xlu0 %v1040, 1
      %v1046 = vpop.permute.xlu0 %1045
      %v1047 = vrot.slane %v1044, 4
      %v1048 = vrot.slane %v1046, 4
      %v1049 = vsel %vm364, %v1047, %v1048
      %vm1050 = vcmask 7168
      %v1051 = vsel %vm1050, %v1044, %v1049
      %v1052 = vsel %vm1050, %v1046, %v1048
      %1055 = vst [vmem:[#allocation4 + $0x24] sm:$0xff] %v1051
      %1056 = vst.msk [vmem:[#allocation4 + $0x2c] sm:$0xf] %vm371, %v1052
      %v1057 = vld [vmem:[#allocation2 + $0x4] sm:$0xff]
      %v1058 = vld [vmem:[#allocation2 + $0xc] sm:$0xf]
      %1059 = vst [vmem:[#allocation4 + $0x30] sm:$0xff] %v1057
      %1060 = vst.msk [vmem:[#allocation4 + $0x38] sm:$0xf] %vm371, %v1058
      %v1061 = vld [vmem:[#allocation2 + $0x4] sm:$0xff]
      %v1062 = vld [vmem:[#allocation2 + $0xc] sm:$0xf]
      %1065 = vrot.lane.b32.xlu0 %v1061, 127
      %v1066 = vpop.permute.xlu0 %1065
      %1067 = vrot.lane.b32.xlu0 %v1062, 127
      %v1068 = vpop.permute.xlu0 %1067
      %v1069 = vrot.slane %v1066, 4
      %v1070 = vrot.slane %v1068, 4
      %v1071 = vsel %vm364, %v1069, %v1070
      %vm1072 = vcmask 1039360
      %v1073 = vsel %vm1072, %v1066, %v1071
      %1076 = vst [vmem:[#allocation4 + $0x3c] sm:$0xff] %v1073
      %1077 = vst.msk [vmem:[#allocation4 + $0x44] sm:$0xf] %vm371, %v1068
      %v1078 = vld [vmem:[#allocation2 + $0x4] sm:$0xff]
      %v1079 = vld [vmem:[#allocation2 + $0xc] sm:$0xf]
      %1082 = vrot.lane.b32.xlu0 %v1078, 111
      %v1083 = vpop.permute.xlu0 %1082
      %1084 = vrot.lane.b32.xlu0 %v1079, 111
      %v1085 = vpop.permute.xlu0 %1084
      %v1086 = vrot.slane %v1083, 4
      %v1087 = vrot.slane %v1085, 4
      %v1088 = vsel %vm364, %v1086, %v1087
      %v1089 = vsel %vm366, %v1083, %v1088
      %1092 = vst [vmem:[#allocation4 + $0x48] sm:$0xff] %v1089
      %1093 = vst.msk [vmem:[#allocation4 + $0x50] sm:$0xf] %vm371, %v1085
      %v1094 = vld [vmem:[#allocation2 + $0x4] sm:$0xff]
      %v1095 = vld [vmem:[#allocation2 + $0xc] sm:$0xf]
      %1098 = vrot.lane.b32.xlu0 %v1094, 110
      %v1099 = vpop.permute.xlu0 %1098
      %1100 = vrot.lane.b32.xlu0 %v1095, 110
      %v1101 = vpop.permute.xlu0 %1100
      %v1102 = vrot.slane %v1099, 4
      %v1103 = vrot.slane %v1101, 4
      %v1104 = vsel %vm364, %v1102, %v1103
      %v1105 = vsel %vm400, %v1099, %v1104
      %1108 = vst [vmem:[#allocation4 + $0x54] sm:$0xff] %v1105
      %1109 = vst.msk [vmem:[#allocation4 + $0x5c] sm:$0xf] %vm371, %v1101
      %v1110 = vld [vmem:[#allocation2 + $0x4] sm:$0xff]
      %v1111 = vld [vmem:[#allocation2 + $0xc] sm:$0xf]
      %1114 = vrot.lane.b32.xlu0 %v1110, 109
      %v1115 = vpop.permute.xlu0 %1114
      %1116 = vrot.lane.b32.xlu0 %v1111, 109
      %v1117 = vpop.permute.xlu0 %1116
      %v1118 = vrot.slane %v1115, 4
      %v1119 = vrot.slane %v1117, 4
      %v1120 = vsel %vm364, %v1118, %v1119
      %v1121 = vsel %vm433, %v1115, %v1120
      %1124 = vst [vmem:[#allocation4 + $0x60] sm:$0xff] %v1121
      %1125 = vst.msk [vmem:[#allocation4 + $0x68] sm:$0xf] %vm371, %v1117
      %v1126 = vld [vmem:[%s6] sm:$0xf]
      %v1127 = vld [vmem:[#allocation4] sm:$0xff]
      %v1128 = vld [vmem:[#allocation4 + $0x8] sm:$0xf]
      %v1129 = vld [vmem:[#allocation4 + $0xc] sm:$0xff]
      %v1130 = vld [vmem:[#allocation4 + $0x14] sm:$0xf]
      %v1131 = vld [vmem:[#allocation4 + $0x18] sm:$0xff]
      %v1132 = vld [vmem:[#allocation4 + $0x20] sm:$0xf]
      %v1133 = vld [vmem:[#allocation4 + $0x24] sm:$0xff]
      %v1134 = vld [vmem:[#allocation4 + $0x2c] sm:$0xf]
      %v1135 = vld [vmem:[#allocation4 + $0x30] sm:$0xff]
      %v1136 = vld [vmem:[#allocation4 + $0x38] sm:$0xf]
      %v1137 = vld [vmem:[#allocation4 + $0x3c] sm:$0xff]
      %v1138 = vld [vmem:[#allocation4 + $0x44] sm:$0xf]
      %v1139 = vld [vmem:[#allocation4 + $0x48] sm:$0xff]
      %v1140 = vld [vmem:[#allocation4 + $0x50] sm:$0xf]
      %v1141 = vld [vmem:[#allocation4 + $0x54] sm:$0xff]
      %v1142 = vld [vmem:[#allocation4 + $0x5c] sm:$0xf]
      %v1143 = vld [vmem:[#allocation4 + $0x60] sm:$0xff]
      %v1144 = vld [vmem:[#allocation4 + $0x68] sm:$0xf]
      %v1163 = vunpack.c.l.b16 %v1127
      %v1164 = vunpack.c.h.b16 %v1127
      %v1165 = vunpack.c.l.b16 %v1128
      %v1166 = vunpack.c.l.b16 %v1129
      %v1167 = vunpack.c.h.b16 %v1129
      %v1168 = vunpack.c.l.b16 %v1130
      %v1169 = vunpack.c.l.b16 %v1131
      %v1170 = vunpack.c.h.b16 %v1131
      %v1171 = vunpack.c.l.b16 %v1132
      %v1172 = vunpack.c.l.b16 %v1133
      %v1173 = vunpack.c.h.b16 %v1133
      %v1174 = vunpack.c.l.b16 %v1134
      %v1175 = vunpack.c.l.b16 %v1135
      %v1176 = vunpack.c.h.b16 %v1135
      %v1177 = vunpack.c.l.b16 %v1136
      %v1178 = vunpack.c.l.b16 %v1137
      %v1179 = vunpack.c.h.b16 %v1137
      %v1180 = vunpack.c.l.b16 %v1138
      %v1181 = vunpack.c.l.b16 %v1139
      %v1182 = vunpack.c.h.b16 %v1139
      %v1183 = vunpack.c.l.b16 %v1140
      %v1184 = vunpack.c.l.b16 %v1141
      %v1185 = vunpack.c.h.b16 %v1141
      %v1186 = vunpack.c.l.b16 %v1142
      %v1187 = vunpack.c.l.b16 %v1143
      %v1188 = vunpack.c.h.b16 %v1143
      %v1189 = vunpack.c.l.b16 %v1144
      %v1190 = vpack.c.b16 %v1166, %v1163
      %v1191 = vpack.c.b16 %v1167, %v1164
      %v1192 = vpack.c.b16 %v1168, %v1165
      %v1193 = vpack.c.b16 %v1172, %v1169
      %v1194 = vpack.c.b16 %v1173, %v1170
      %v1195 = vpack.c.b16 %v1174, %v1171
      %v1196 = vpack.c.b16 %v1178, %v1175
      %v1197 = vpack.c.b16 %v1179, %v1176
      %v1198 = vpack.c.b16 %v1180, %v1177
      %v1199 = vpack.c.b16 %v1184, %v1181
      %v1200 = vpack.c.b16 %v1185, %v1182
      %v1201 = vpack.c.b16 %v1186, %v1183
      %v1202 = vpack.c.b16 %v1187, %v1187
      %v1203 = vpack.c.b16 %v1188, %v1188
      %v1204 = vpack.c.b16 %v1189, %v1189
      %vm1217 = vcmask 588800
      %v1219 = vsel %vm1217, %v1126, 0
      %vm1221 = vcmask 1043456
      %v1223 = vsel %vm1221, %v1202, 0
      %v1226 = vsel %vm1221, %v1203, 0
      %v1229 = vsel %vm1221, %v1204, 0
      %1231 = vmatprep.subr.bf16.mxu0 0
      %1232 = vmatpush1.bf16.msra.mxu0 0
      %1233 = vmatprep.subr.bf16.mxu0 0
      %1234 = vmatpush1.bf16.msra.mxu0 0
      %1235 = vmatprep.subr.bf16.mxu0 0
      %1236 = vmatpush1.bf16.msra.mxu0 0
      %1237 = vmatprep.subr.bf16.mxu0 %v1226
      %1238 = vmatpush1.bf16.msra.mxu0 %v1223
      %1239 = vmatprep.subr.bf16.mxu0 %v1200
      %1240 = vmatpush1.bf16.msra.mxu0 %v1199
      %1241 = vmatprep.subr.bf16.mxu0 %v1197
      %1242 = vmatpush1.bf16.msra.mxu0 %v1196
      %1243 = vmatprep.subr.bf16.mxu0 %v1194
      %1244 = vmatpush1.bf16.msra.mxu0 %v1193
      %1245 = vmatprep.subr.bf16.mxu0 %v1191
      %1246 = vmatpush1.bf16.msra.mxu0 %v1190
      %1247 = vmatprep.subr.bf16.mxu0 0
      %1248 = vmatpush2.bf16.msra.mxu0 0
      %1249 = vmatprep.subr.bf16.mxu0 0
      %1250 = vmatpush2.bf16.msra.mxu0 0
      %1251 = vmatprep.subr.bf16.mxu0 0
      %1252 = vmatpush2.bf16.msra.mxu0 0
      %1253 = vmatprep.subr.bf16.mxu0 0
      %1254 = vmatpush2.bf16.msra.mxu0 0
      %1255 = vmatprep.subr.bf16.mxu0 0
      %1256 = vmatpush2.bf16.msra.mxu0 0
      %1257 = vmatprep.subr.bf16.mxu0 0
      %1258 = vmatpush2.bf16.msra.mxu0 0
      %1259 = vmatprep.subr.bf16.mxu0 0
      %1260 = vmatpush2.bf16.msra.mxu0 0
      %1261 = vmatprep.subr.bf16.mxu0 0
      %1262 = vmatpush2.bf16.msra.mxu0 0
      %1263 = vmatprep.mubr.bf16.mxu0 0
      %1264 = vmatmul.mubr.bf16.gmra.mxu0 %v1219
      %v1265 = vpop.f32.mrf.mxu0
      %v1266 = vadd.f32 0.0, %v1265
      %v1267 = vpop.f32.mrf.mxu0
      %v1268 = vadd.f32 0.0, %v1267
      %v1269 = vpop.f32.mrf.mxu0
      %v1270 = vpop.f32.mrf.mxu0
      %1271 = vdwg.mxu0
      %1272 = vmatprep.subr.bf16.mxu0 0
      %1273 = vmatpush1.bf16.msra.mxu0 0
      %1274 = vmatprep.subr.bf16.mxu0 0
      %1275 = vmatpush1.bf16.msra.mxu0 0
      %1276 = vmatprep.subr.bf16.mxu0 0
      %1277 = vmatpush1.bf16.msra.mxu0 0
      %1278 = vmatprep.subr.bf16.mxu0 0
      %1279 = vmatpush1.bf16.msra.mxu0 %v1229
      %1280 = vmatprep.subr.bf16.mxu0 0
      %1281 = vmatpush1.bf16.msra.mxu0 %v1201
      %1282 = vmatprep.subr.bf16.mxu0 0
      %1283 = vmatpush1.bf16.msra.mxu0 %v1198
      %1284 = vmatprep.subr.bf16.mxu0 0
      %1285 = vmatpush1.bf16.msra.mxu0 %v1195
      %1286 = vmatprep.subr.bf16.mxu0 0
      %1287 = vmatpush1.bf16.msra.mxu0 %v1192
      %1288 = vmatprep.subr.bf16.mxu0 0
      %1289 = vmatpush2.bf16.msra.mxu0 0
      %1290 = vmatprep.subr.bf16.mxu0 0
      %1291 = vmatpush2.bf16.msra.mxu0 0
      %1292 = vmatprep.subr.bf16.mxu0 0
      %1293 = vmatpush2.bf16.msra.mxu0 0
      %1294 = vmatprep.subr.bf16.mxu0 0
      %1295 = vmatpush2.bf16.msra.mxu0 0
      %1296 = vmatprep.subr.bf16.mxu0 0
      %1297 = vmatpush2.bf16.msra.mxu0 0
      %1298 = vmatprep.subr.bf16.mxu0 0
      %1299 = vmatpush2.bf16.msra.mxu0 0
      %1300 = vmatprep.subr.bf16.mxu0 0
      %1301 = vmatpush2.bf16.msra.mxu0 0
      %1302 = vmatprep.subr.bf16.mxu0 0
      %1303 = vmatpush2.bf16.msra.mxu0 0
      %1304 = vmatprep.mubr.bf16.mxu0 0
      %1305 = vmatmul.mubr.bf16.gmra.mxu0 %v1219
      %v1306 = vpop.f32.mrf.mxu0
      %v1307 = vadd.f32 0.0, %v1306
      %v1308 = vpop.f32.mrf.mxu0
      %v1309 = vpop.f32.mrf.mxu0
      %v1310 = vpop.f32.mrf.mxu0
      %1311 = vdwg.mxu0
      %v1312 = vld [vmem:[%s7] sm:$0xff]
      %1314 = vset.pattern.permute.xlu0 0
      %1315 = vperm.xlu0 %1314, %v1312
      %v1316 = vpop.permute.xlu0 %1315
      %v1318 = vmul.f32 %v1266, %v1316
      %v1319 = vmul.f32 %v1268, %v1316
      %v1320 = vmul.f32 %v1307, %v1316
      %v1321 = vld [vmem:[%s8] sm:$0xff]
      %1323 = vset.pattern.permute.xlu0 0
      %1324 = vperm.xlu0 %1323, %v1321
      %v1325 = vpop.permute.xlu0 %1324
      %v1327 = vadd.f32 %v1318, %v1325
      %v1328 = vadd.f32 %v1319, %v1325
      %v1329 = vadd.f32 %v1320, %v1325
      %v1330 = vmax.f32 %v1327, 0.0
      %v1331 = vmax.f32 %v1328, 0.0
      %v1332 = vmax.f32 %v1329, 0.0
      %1333 = vst [vmem:[%s352] sm:$0xff] %v1330
      %1334 = vst [vmem:[%s352 + $0x8] sm:$0xff] %v1331
      %vm1335 = vcmask 261120
      %1336 = vst.msk [vmem:[%s352 + $0x10] sm:$0xff] %vm1335, %v1332
      %p1337 = scmp.lt.s32.totalorder %s20, 1
      %s1338 = scalar_select %p1337, %s20, 1
      %s1339 = smul.addr %s1338, 3
      %s1340 = smul.addr %s1339, 8
      %s1341 = scalar_lea.vmem %s9, %s1340
      // Predicated region
      $region57: #{up_forward.1} parent=55 // pred_check
        %p1342 = pneg %p237
      $region58: #{up_forward.1} parent=55 // pred_check_branch
        %1344 = sbr.rel (%p1342) target = $region60
      $region59: #{up_forward.1} parent=55 // pred_region
        _
      $region60: #{up_forward.1} parent=55 // pred_fallthru
        _
    $region56: #{up_forward.1} parent=5 // pred_fallthru
      _
    %p1345 = scmp.le.s32.totalorder 2, %s15
    // Predicated region
    $region61: #{up_forward.1} parent=5 // pred_check
      %p1346 = pneg %p1345
    $region62: #{up_forward.1} parent=5 // pred_check_branch
      %1348 = sbr.rel (%p1346) target = $region64
    $region63: #{up_forward.1} parent=5 // pred_region
      %s1349 = ssub.s32 %s15, 2
      // Predicated region
      $region65: #{up_forward.1} parent=63 // pred_check
        %p1350 = pneg %p243
      $region66: #{up_forward.1} parent=63 // pred_check_branch
        %1352 = sbr.rel (%p1350) target = $region68
      $region67: #{up_forward.1} parent=63 // pred_region
        %p1353 = scmp.lt.s32.totalorder %s21, 1
        %s1354 = scalar_select %p1353, %s21, 1
        %s1355 = smul.addr %s1354, 3
        %s1356 = smul.addr %s1355, 8
        %s1357 = scalar_lea.vmem %s9, %s1356
      $region68: #{up_forward.1} parent=63 // pred_fallthru
        _
    $region64: #{up_forward.1} parent=5 // pred_fallthru
      _
  $region6: #{up_forward.1} parent=0 // loop_footer
    %s19 = sadd.s32 1, %s15
  $region7: #{up_forward.1} parent=0 // loop_footer_branch
    %14 = sbr.rel target = $region3
  $region8: #{up_forward.1} parent=0 // loop_exit
    _

</llo_original>
